<compile_context>
chip_gen: v7x
topology: tpu7x:2x2x1
jax: 0.10.0
libtpu: 0.0.40
codegen_flags: <defaults>
</compile_context>

<pallas_src>
import functools

import jax
import jax.numpy as jnp
import numpy as np
from jax.experimental import pallas as pl
from jax.experimental.pallas import tpu as pltpu

EPS = 1e-5
LANE = 128
SUBLANE = 8


def _round_up(x, m):
    return (x + m - 1) // m * m


def _mlp_bn_kernel(x_ref,
                   w1_ref, b1_ref, g1_ref, be1_ref,
                   w2_hbm, b2_ref, g2_ref, be2_ref,
                   w3_hbm, b3_ref, g3_ref, be3_ref,
                   wo_hbm, bo_ref,
                   o_ref,
                   w2_buf, w3_buf, wo_buf, sems,
                   *, inv_n):
    """Fused MLP: 3x (Linear -> ReLU -> BatchNorm1d[train]) + final Linear.

    Small operands (x, w1, biases, gamma/beta) arrive in VMEM via BlockSpec.
    The large later-layer weights (w2, w3, wo) live in HBM (memory_space=ANY)
    and are DMA'd into VMEM scratch here so the transfer overlaps layer-1/2
    compute.  Weights arrive pre-transposed as (in, out); vectors as (1, F).
    """
    # Kick off the later-layer weight DMAs up front; wait just before use.
    cp2 = pltpu.make_async_copy(w2_hbm, w2_buf, sems.at[0])
    cp3 = pltpu.make_async_copy(w3_hbm, w3_buf, sems.at[1])
    cpo = pltpu.make_async_copy(wo_hbm, wo_buf, sems.at[2])
    cp2.start()
    cp3.start()
    cpo.start()

    def linear_relu_bn(h, w, b_ref, g_ref, be_ref):
        # PyTorch Linear y = h @ W.T + b, with W already stored transposed
        # (and possibly bf16).  MXU accumulates in f32.
        z = jnp.dot(h.astype(w.dtype), w,
                    preferred_element_type=jnp.float32) + b_ref[...]
        z = jnp.maximum(z, 0.0)
        # One-pass BN (training mode, biased variance); statistics in f32.
        # TODO(synk): at large batch, compute s1/s2 on the MXU (ones @ z /
        # ones @ z*z) and split the batch over grid=(2,) "parallel" cores on
        # v7x, exchanging partial sums; re-derive tile sizes for 64 MiB VMEM.
        s1 = jnp.sum(z, axis=0, keepdims=True)
        s2 = jnp.sum(z * z, axis=0, keepdims=True)
        mean = s1 * inv_n
        var = jnp.maximum(s2 * inv_n - mean * mean, 0.0)  # clamp cancellation
        scale = g_ref[...] * jax.lax.rsqrt(var + EPS)
        shift = be_ref[...] - mean * scale
        return z * scale + shift

    h = linear_relu_bn(x_ref[...], w1_ref[...], b1_ref, g1_ref, be1_ref)
    cp2.wait()
    h = linear_relu_bn(h, w2_buf[...], b2_ref, g2_ref, be2_ref)
    cp3.wait()
    h = linear_relu_bn(h, w3_buf[...], b3_ref, g3_ref, be3_ref)
    cpo.wait()
    o_ref[...] = (jnp.dot(h.astype(wo_buf.dtype), wo_buf[...],
                          preferred_element_type=jnp.float32)
                  + bo_ref[...]).astype(o_ref.dtype)


def _prepare_params(params, weight_dtype=jnp.bfloat16):
    """Layout plumbing, done ONCE per model (cached by PallasMLP):
    transpose W to (in, out), pad the w1 K-axis to 8 sublanes and the output
    feature axis to a 128-lane multiple (zero padding preserves the math),
    cast weights to `weight_dtype`, biases/gamma/beta -> f32 (1, F) rows."""
    (w1, b1, g1, be1, w2, b2, g2, be2, w3, b3, g3, be3, wo, bo) = params
    in_features = w1.shape[1]
    out_features = wo.shape[0]
    in_pad = _round_up(in_features, SUBLANE)   # sublane axis of w1^T
    out_pad = _round_up(out_features, LANE)    # lane axis of the output

    def t_pad(w, pad_in=None, pad_out=None):
        wt = w.T  # (in, out)
        if pad_in is not None and wt.shape[0] < pad_in:
            wt = jnp.pad(wt, ((0, pad_in - wt.shape[0]), (0, 0)))
        if pad_out is not None and wt.shape[1] < pad_out:
            wt = jnp.pad(wt, ((0, 0), (0, pad_out - wt.shape[1])))
        return wt.astype(weight_dtype)

    def row(v, pad_to=None):
        v2 = v.reshape(1, -1)
        if pad_to is not None and v2.shape[1] < pad_to:
            v2 = jnp.pad(v2, ((0, 0), (0, pad_to - v2.shape[1])))
        return v2.astype(jnp.float32)

    return (t_pad(w1, pad_in=in_pad), row(b1), row(g1), row(be1),
            t_pad(w2), row(b2), row(g2), row(be2),
            t_pad(w3), row(b3), row(g3), row(be3),
            t_pad(wo, pad_out=out_pad), row(bo, pad_to=out_pad))


def _forward_impl(x, *prepped, out_features):
    """Traced body of the jitted forward: pad x, one pallas_call, slice."""
    (w1t, b1, g1, be1, w2t, b2, g2, be2, w3t, b3, g3, be3, wot, bo) = prepped
    n, in_features = x.shape
    in_pad = w1t.shape[0]
    h1d, h2d = w2t.shape
    h3d = w3t.shape[1]
    out_pad = wot.shape[1]
    wdt = w2t.dtype

    if in_pad != in_features:
        x = jnp.pad(x, ((0, 0), (0, in_pad - in_features)))

    kernel = functools.partial(_mlp_bn_kernel, inv_n=1.0 / n)
    vmem = pl.BlockSpec(memory_space=pltpu.MemorySpace.VMEM)
    hbm = pl.BlockSpec(memory_space=pl.ANY)

    out_padded = pl.pallas_call(
        kernel,
        out_shape=jax.ShapeDtypeStruct((n, out_pad), jnp.float32),
        in_specs=[vmem,                      # x
                  vmem, vmem, vmem, vmem,    # w1 (small), b1, g1, be1
                  hbm, vmem, vmem, vmem,     # w2 (manual DMA), b2, g2, be2
                  hbm, vmem, vmem, vmem,     # w3 (manual DMA), b3, g3, be3
                  hbm, vmem],                # wo (manual DMA), bo
        out_specs=vmem,
        scratch_shapes=[pltpu.VMEM((h1d, h2d), wdt),
                        pltpu.VMEM((h2d, h3d), wdt),
                        pltpu.VMEM((h3d, out_pad), wdt),
                        pltpu.SemaphoreType.DMA((3,))],
        compiler_params=pltpu.CompilerParams(
            # Working set ~1.5 MiB; 32 MiB keeps this template safe on v7x's
            # 64 MiB physical VMEM as well as v5e/v6e.
            vmem_limit_bytes=32 * 1024 * 1024),
    )(x, w1t, b1, g1, be1, w2t, b2, g2, be2, w3t, b3, g3, be3, wot, bo)
    return out_padded[:, :out_features]


class PallasMLP:
    """Caches prepped parameters and exposes a single-jit forward."""

    def __init__(self, params, weight_dtype=jnp.bfloat16):
        self.out_features = int(params[-2].shape[0])
        # Parameter prep happens exactly once per model; results are reused
        # across every forward call (no per-call transpose/pad HBM traffic).
        self.prepped = tuple(_prepare_params(params, weight_dtype))
        # Single jitted executable: pad -> pallas_call -> slice (one dispatch).
        self._fwd = jax.jit(
            functools.partial(_forward_impl, out_features=self.out_features))

    def __call__(self, x):
        return self._fwd(x, *self.prepped)


def init_params(key, in_features, h1, h2, h3, out_features):
    """Matches the PyTorch module __init__: Linear weights xavier_uniform_,
    Linear biases U(-1/sqrt(fan_in), 1/sqrt(fan_in)) (PyTorch default),
    BatchNorm1d gamma=1, beta=0. Returned in PyTorch layout (W: (out, in))."""
    def xavier(k, fan_out, fan_in):
        bound = float(np.sqrt(6.0 / (fan_in + fan_out)))
        return jax.random.uniform(k, (fan_out, fan_in), jnp.float32, -bound, bound)

    def lin_bias(k, fan_out, fan_in):
        bound = 1.0 / float(np.sqrt(fan_in))
        return jax.random.uniform(k, (fan_out,), jnp.float32, -bound, bound)

    ks = jax.random.split(key, 8)
    w1 = xavier(ks[0], h1, in_features); b1 = lin_bias(ks[1], h1, in_features)
    w2 = xavier(ks[2], h2, h1);          b2 = lin_bias(ks[3], h2, h1)
    w3 = xavier(ks[4], h3, h2);          b3 = lin_bias(ks[5], h3, h2)
    wo = xavier(ks[6], out_features, h3); bo = lin_bias(ks[7], out_features, h3)
    g1, be1 = jnp.ones((h1,), jnp.float32), jnp.zeros((h1,), jnp.float32)
    g2, be2 = jnp.ones((h2,), jnp.float32), jnp.zeros((h2,), jnp.float32)
    g3, be3 = jnp.ones((h3,), jnp.float32), jnp.zeros((h3,), jnp.float32)
    return (w1, b1, g1, be1, w2, b2, g2, be2, w3, b3, g3, be3, wo, bo)


def reference_forward(x, params):
    """Pure-JAX f32 reference of the PyTorch forward (training-mode BN)."""
    (w1, b1, g1, be1, w2, b2, g2, be2, w3, b3, g3, be3, wo, bo) = params

    def block(h, w, b, g, be):
        z = jnp.maximum(h @ w.T + b, 0.0)
        mean = jnp.mean(z, axis=0, keepdims=True)
        var = jnp.mean((z - mean) ** 2, axis=0, keepdims=True)
        return (z - mean) / jnp.sqrt(var + EPS) * g + be

    h = block(x, w1, b1, g1, be1)
    h = block(h, w2, b2, g2, be2)
    h = block(h, w3, b3, g3, be3)
    return h @ wo.T + bo


def reference_forward_matched(x, prepped, out_features):
    """Pure-JAX reference that mirrors the kernel's exact math (pre-transposed
    padded weights in their stored dtype, bf16 activation casts before each
    dot, f32 accumulation, one-pass biased BN variance)."""
    (w1t, b1, g1, be1, w2t, b2, g2, be2, w3t, b3, g3, be3, wot, bo) = prepped
    in_pad = w1t.shape[0]
    n, f = x.shape
    if in_pad != f:
        x = jnp.pad(x, ((0, 0), (0, in_pad - f)))

    def block(h, wt, b, g, be):
        z = jnp.dot(h.astype(wt.dtype), wt,
                    preferred_element_type=jnp.float32) + b
        z = jnp.maximum(z, 0.0)
        mean = jnp.mean(z, axis=0, keepdims=True)
        var = jnp.maximum(jnp.mean(z * z, axis=0, keepdims=True) - mean * mean, 0.0)
        scale = g * jax.lax.rsqrt(var + EPS)
        return z * scale + (be - mean * scale)

    h = block(x, w1t, b1, g1, be1)
    h = block(h, w2t, b2, g2, be2)
    h = block(h, w3t, b3, g3, be3)
    out = jnp.dot(h.astype(wot.dtype), wot,
                  preferred_element_type=jnp.float32) + bo
    return out[:, :out_features]


# TODO(synk): BatchNorm1d running_mean / running_var in-place buffer updates are
# not reproduced (forward output in training mode does not depend on them).

if __name__ == "__main__":
    # Module defaults: in_features=5, h1=256, h2=512, h3=256, out_features=10.
    batch, in_features, h1, h2, h3, out_features = 16, 5, 256, 512, 256, 10
    key = jax.random.PRNGKey(0)
    k_x, k_p = jax.random.split(key)
    x = jax.random.normal(k_x, (batch, in_features), jnp.float32)
    params = init_params(k_p, in_features, h1, h2, h3, out_features)
    ref32 = reference_forward(x, params)

    # 1) Exact-precision path (f32 weights): tight check against the
    #    PyTorch-semantics f32 reference.
    model_f32 = PallasMLP(params, weight_dtype=jnp.float32)
    out_f32 = jax.block_until_ready(model_f32(x))
    assert out_f32.shape == (batch, out_features)
    np.testing.assert_allclose(np.asarray(out_f32), np.asarray(ref32),
                               rtol=1e-3, atol=2e-4)

    # 2) bf16-weight fast path (weight-bandwidth bound kernel): tight check
    #    against a matched-precision reference, loose sanity check against the
    #    f32 reference (margin = bf16 weight/activation quantization error
    #    compounded through 3 BN layers).
    model_bf16 = PallasMLP(params, weight_dtype=jnp.bfloat16)
    out_bf16 = jax.block_until_ready(model_bf16(x))
    ref_bf16 = reference_forward_matched(x, model_bf16.prepped, out_features)
    np.testing.assert_allclose(np.asarray(out_bf16), np.asarray(ref_bf16),
                               rtol=1e-3, atol=1e-4)
    np.testing.assert_allclose(np.asarray(out_bf16), np.asarray(ref32),
                               rtol=5e-2, atol=1e-1)

    print("KERNEL_OK")
</pallas_src>

<mosaic_0001>
module attributes {stable_mosaic.version = 11 : i64} {
  func.func @_mlp_bn_kernel(%arg0: memref<16x8xf32, #tpu.memory_space<vmem>>, %arg1: memref<8x256xf32, #tpu.memory_space<vmem>>, %arg2: memref<1x256xf32, #tpu.memory_space<vmem>>, %arg3: memref<1x256xf32, #tpu.memory_space<vmem>>, %arg4: memref<1x256xf32, #tpu.memory_space<vmem>>, %arg5: memref<256x512xf32, #tpu.memory_space<any>>, %arg6: memref<1x512xf32, #tpu.memory_space<vmem>>, %arg7: memref<1x512xf32, #tpu.memory_space<vmem>>, %arg8: memref<1x512xf32, #tpu.memory_space<vmem>>, %arg9: memref<512x256xf32, #tpu.memory_space<any>>, %arg10: memref<1x256xf32, #tpu.memory_space<vmem>>, %arg11: memref<1x256xf32, #tpu.memory_space<vmem>>, %arg12: memref<1x256xf32, #tpu.memory_space<vmem>>, %arg13: memref<256x128xf32, #tpu.memory_space<any>>, %arg14: memref<1x128xf32, #tpu.memory_space<vmem>>, %arg15: memref<16x128xf32, #tpu.memory_space<vmem>>, %arg16: memref<256x512xf32, #tpu.memory_space<vmem>>, %arg17: memref<512x256xf32, #tpu.memory_space<vmem>>, %arg18: memref<256x128xf32, #tpu.memory_space<vmem>>, %arg19: memref<3x!tpu.dma_semaphore, #tpu.memory_space<semaphore_mem>>) attributes {dimension_semantics = [], scalar_prefetch = 0 : i64, scratch_operands = 4 : i64, tpu.core_type = #tpu.core_type<tc>} {
    %c0_i32 = arith.constant 0 : i32
    %0 = tpu.memref_slice %arg19[%c0_i32] : memref<3x!tpu.dma_semaphore, #tpu.memory_space<semaphore_mem>> -> memref<1x!tpu.dma_semaphore, #tpu.memory_space<semaphore_mem>>
    %1 = tpu.memref_squeeze %0 : memref<1x!tpu.dma_semaphore, #tpu.memory_space<semaphore_mem>> -> memref<!tpu.dma_semaphore, #tpu.memory_space<semaphore_mem>>
    tpu.enqueue_dma source(%arg5 : memref<256x512xf32, #tpu.memory_space<any>>) target(%arg16 : memref<256x512xf32, #tpu.memory_space<vmem>>) target_semaphore(%1 : memref<!tpu.dma_semaphore, #tpu.memory_space<semaphore_mem>>)
    %c1_i32 = arith.constant 1 : i32
    %2 = tpu.memref_slice %arg19[%c1_i32] : memref<3x!tpu.dma_semaphore, #tpu.memory_space<semaphore_mem>> -> memref<1x!tpu.dma_semaphore, #tpu.memory_space<semaphore_mem>>
    %3 = tpu.memref_squeeze %2 : memref<1x!tpu.dma_semaphore, #tpu.memory_space<semaphore_mem>> -> memref<!tpu.dma_semaphore, #tpu.memory_space<semaphore_mem>>
    tpu.enqueue_dma source(%arg9 : memref<512x256xf32, #tpu.memory_space<any>>) target(%arg17 : memref<512x256xf32, #tpu.memory_space<vmem>>) target_semaphore(%3 : memref<!tpu.dma_semaphore, #tpu.memory_space<semaphore_mem>>)
    %c2_i32 = arith.constant 2 : i32
    %4 = tpu.memref_slice %arg19[%c2_i32] : memref<3x!tpu.dma_semaphore, #tpu.memory_space<semaphore_mem>> -> memref<1x!tpu.dma_semaphore, #tpu.memory_space<semaphore_mem>>
    %5 = tpu.memref_squeeze %4 : memref<1x!tpu.dma_semaphore, #tpu.memory_space<semaphore_mem>> -> memref<!tpu.dma_semaphore, #tpu.memory_space<semaphore_mem>>
    tpu.enqueue_dma source(%arg13 : memref<256x128xf32, #tpu.memory_space<any>>) target(%arg18 : memref<256x128xf32, #tpu.memory_space<vmem>>) target_semaphore(%5 : memref<!tpu.dma_semaphore, #tpu.memory_space<semaphore_mem>>)
    %c0 = arith.constant 0 : index
    %c0_0 = arith.constant 0 : index
    %6 = vector.load %arg0[%c0, %c0_0] : memref<16x8xf32, #tpu.memory_space<vmem>>, vector<16x8xf32>
    %c0_1 = arith.constant 0 : index
    %c0_2 = arith.constant 0 : index
    %7 = vector.load %arg1[%c0_1, %c0_2] : memref<8x256xf32, #tpu.memory_space<vmem>>, vector<8x256xf32>
    %cst = arith.constant dense<0.000000e+00> : vector<16x256xf32>
    %8 = tpu.matmul %6, %7, %cst {dimension_numbers = #tpu.dot_dimension_numbers<[1], [0], [0], [1], [0, 0, 1, 1], [], []>} : vector<16x8xf32>, vector<8x256xf32>, vector<16x256xf32> -> vector<16x256xf32>
    %c0_3 = arith.constant 0 : index
    %c0_4 = arith.constant 0 : index
    %9 = vector.load %arg2[%c0_3, %c0_4] : memref<1x256xf32, #tpu.memory_space<vmem>>, vector<1x256xf32>
    %10 = vector.broadcast %9 : vector<1x256xf32> to vector<16x256xf32>
    %11 = arith.addf %8, %10 : vector<16x256xf32>
    %cst_5 = arith.constant 0.000000e+00 : f32
    %12 = vector.broadcast %cst_5 : f32 to vector<16x256xf32>
    %13 = arith.maximumf %11, %12 : vector<16x256xf32>
    %cst_6 = arith.constant dense<0.000000e+00> : vector<256xf32>
    %14 = vector.multi_reduction <add>, %13, %cst_6 [0] : vector<16x256xf32> to vector<256xf32>
    %15 = vector.shape_cast %14 : vector<256xf32> to vector<1x256xf32>
    %16 = arith.mulf %13, %13 : vector<16x256xf32>
    %cst_7 = arith.constant dense<0.000000e+00> : vector<256xf32>
    %17 = vector.multi_reduction <add>, %16, %cst_7 [0] : vector<16x256xf32> to vector<256xf32>
    %18 = vector.shape_cast %17 : vector<256xf32> to vector<1x256xf32>
    %cst_8 = arith.constant 6.250000e-02 : f32
    %19 = vector.broadcast %cst_8 : f32 to vector<1x256xf32>
    %20 = arith.mulf %15, %19 : vector<1x256xf32>
    %cst_9 = arith.constant 6.250000e-02 : f32
    %21 = vector.broadcast %cst_9 : f32 to vector<1x256xf32>
    %22 = arith.mulf %18, %21 : vector<1x256xf32>
    %23 = arith.mulf %20, %20 : vector<1x256xf32>
    %24 = arith.subf %22, %23 : vector<1x256xf32>
    %cst_10 = arith.constant 0.000000e+00 : f32
    %25 = vector.broadcast %cst_10 : f32 to vector<1x256xf32>
    %26 = arith.maximumf %24, %25 : vector<1x256xf32>
    %c0_11 = arith.constant 0 : index
    %c0_12 = arith.constant 0 : index
    %27 = vector.load %arg3[%c0_11, %c0_12] : memref<1x256xf32, #tpu.memory_space<vmem>>, vector<1x256xf32>
    %cst_13 = arith.constant 9.99999974E-6 : f32
    %28 = vector.broadcast %cst_13 : f32 to vector<1x256xf32>
    %29 = arith.addf %26, %28 : vector<1x256xf32>
    %30 = math.rsqrt %29 : vector<1x256xf32>
    %31 = arith.mulf %27, %30 : vector<1x256xf32>
    %c0_14 = arith.constant 0 : index
    %c0_15 = arith.constant 0 : index
    %32 = vector.load %arg4[%c0_14, %c0_15] : memref<1x256xf32, #tpu.memory_space<vmem>>, vector<1x256xf32>
    %33 = arith.mulf %20, %31 : vector<1x256xf32>
    %34 = arith.subf %32, %33 : vector<1x256xf32>
    %35 = vector.broadcast %31 : vector<1x256xf32> to vector<16x256xf32>
    %36 = arith.mulf %13, %35 : vector<16x256xf32>
    %37 = vector.broadcast %34 : vector<1x256xf32> to vector<16x256xf32>
    %38 = arith.addf %36, %37 : vector<16x256xf32>
    %c0_i32_16 = arith.constant 0 : i32
    %39 = tpu.memref_slice %arg19[%c0_i32_16] : memref<3x!tpu.dma_semaphore, #tpu.memory_space<semaphore_mem>> -> memref<1x!tpu.dma_semaphore, #tpu.memory_space<semaphore_mem>>
    %40 = tpu.memref_squeeze %39 : memref<1x!tpu.dma_semaphore, #tpu.memory_space<semaphore_mem>> -> memref<!tpu.dma_semaphore, #tpu.memory_space<semaphore_mem>>
    tpu.wait_dma2 semaphore(%40 : memref<!tpu.dma_semaphore, #tpu.memory_space<semaphore_mem>>) src(%arg5 : memref<256x512xf32, #tpu.memory_space<any>>) dst(%arg16 : memref<256x512xf32, #tpu.memory_space<vmem>>)
    %c0_17 = arith.constant 0 : index
    %c0_18 = arith.constant 0 : index
    %41 = vector.load %arg16[%c0_17, %c0_18] : memref<256x512xf32, #tpu.memory_space<vmem>>, vector<256x512xf32>
    %cst_19 = arith.constant dense<0.000000e+00> : vector<16x512xf32>
    %42 = tpu.matmul %38, %41, %cst_19 {dimension_numbers = #tpu.dot_dimension_numbers<[1], [0], [0], [1], [0, 0, 1, 1], [], []>} : vector<16x256xf32>, vector<256x512xf32>, vector<16x512xf32> -> vector<16x512xf32>
    %c0_20 = arith.constant 0 : index
    %c0_21 = arith.constant 0 : index
    %43 = vector.load %arg6[%c0_20, %c0_21] : memref<1x512xf32, #tpu.memory_space<vmem>>, vector<1x512xf32>
    %44 = vector.broadcast %43 : vector<1x512xf32> to vector<16x512xf32>
    %45 = arith.addf %42, %44 : vector<16x512xf32>
    %cst_22 = arith.constant 0.000000e+00 : f32
    %46 = vector.broadcast %cst_22 : f32 to vector<16x512xf32>
    %47 = arith.maximumf %45, %46 : vector<16x512xf32>
    %cst_23 = arith.constant dense<0.000000e+00> : vector<512xf32>
    %48 = vector.multi_reduction <add>, %47, %cst_23 [0] : vector<16x512xf32> to vector<512xf32>
    %49 = vector.shape_cast %48 : vector<512xf32> to vector<1x512xf32>
    %50 = arith.mulf %47, %47 : vector<16x512xf32>
    %cst_24 = arith.constant dense<0.000000e+00> : vector<512xf32>
    %51 = vector.multi_reduction <add>, %50, %cst_24 [0] : vector<16x512xf32> to vector<512xf32>
    %52 = vector.shape_cast %51 : vector<512xf32> to vector<1x512xf32>
    %cst_25 = arith.constant 6.250000e-02 : f32
    %53 = vector.broadcast %cst_25 : f32 to vector<1x512xf32>
    %54 = arith.mulf %49, %53 : vector<1x512xf32>
    %cst_26 = arith.constant 6.250000e-02 : f32
    %55 = vector.broadcast %cst_26 : f32 to vector<1x512xf32>
    %56 = arith.mulf %52, %55 : vector<1x512xf32>
    %57 = arith.mulf %54, %54 : vector<1x512xf32>
    %58 = arith.subf %56, %57 : vector<1x512xf32>
    %cst_27 = arith.constant 0.000000e+00 : f32
    %59 = vector.broadcast %cst_27 : f32 to vector<1x512xf32>
    %60 = arith.maximumf %58, %59 : vector<1x512xf32>
    %c0_28 = arith.constant 0 : index
    %c0_29 = arith.constant 0 : index
    %61 = vector.load %arg7[%c0_28, %c0_29] : memref<1x512xf32, #tpu.memory_space<vmem>>, vector<1x512xf32>
    %cst_30 = arith.constant 9.99999974E-6 : f32
    %62 = vector.broadcast %cst_30 : f32 to vector<1x512xf32>
    %63 = arith.addf %60, %62 : vector<1x512xf32>
    %64 = math.rsqrt %63 : vector<1x512xf32>
    %65 = arith.mulf %61, %64 : vector<1x512xf32>
    %c0_31 = arith.constant 0 : index
    %c0_32 = arith.constant 0 : index
    %66 = vector.load %arg8[%c0_31, %c0_32] : memref<1x512xf32, #tpu.memory_space<vmem>>, vector<1x512xf32>
    %67 = arith.mulf %54, %65 : vector<1x512xf32>
    %68 = arith.subf %66, %67 : vector<1x512xf32>
    %69 = vector.broadcast %65 : vector<1x512xf32> to vector<16x512xf32>
    %70 = arith.mulf %47, %69 : vector<16x512xf32>
    %71 = vector.broadcast %68 : vector<1x512xf32> to vector<16x512xf32>
    %72 = arith.addf %70, %71 : vector<16x512xf32>
    %c1_i32_33 = arith.constant 1 : i32
    %73 = tpu.memref_slice %arg19[%c1_i32_33] : memref<3x!tpu.dma_semaphore, #tpu.memory_space<semaphore_mem>> -> memref<1x!tpu.dma_semaphore, #tpu.memory_space<semaphore_mem>>
    %74 = tpu.memref_squeeze %73 : memref<1x!tpu.dma_semaphore, #tpu.memory_space<semaphore_mem>> -> memref<!tpu.dma_semaphore, #tpu.memory_space<semaphore_mem>>
    tpu.wait_dma2 semaphore(%74 : memref<!tpu.dma_semaphore, #tpu.memory_space<semaphore_mem>>) src(%arg9 : memref<512x256xf32, #tpu.memory_space<any>>) dst(%arg17 : memref<512x256xf32, #tpu.memory_space<vmem>>)
    %c0_34 = arith.constant 0 : index
    %c0_35 = arith.constant 0 : index
    %75 = vector.load %arg17[%c0_34, %c0_35] : memref<512x256xf32, #tpu.memory_space<vmem>>, vector<512x256xf32>
    %cst_36 = arith.constant dense<0.000000e+00> : vector<16x256xf32>
    %76 = tpu.matmul %72, %75, %cst_36 {dimension_numbers = #tpu.dot_dimension_numbers<[1], [0], [0], [1], [0, 0, 1, 1], [], []>} : vector<16x512xf32>, vector<512x256xf32>, vector<16x256xf32> -> vector<16x256xf32>
    %c0_37 = arith.constant 0 : index
    %c0_38 = arith.constant 0 : index
    %77 = vector.load %arg10[%c0_37, %c0_38] : memref<1x256xf32, #tpu.memory_space<vmem>>, vector<1x256xf32>
    %78 = vector.broadcast %77 : vector<1x256xf32> to vector<16x256xf32>
    %79 = arith.addf %76, %78 : vector<16x256xf32>
    %cst_39 = arith.constant 0.000000e+00 : f32
    %80 = vector.broadcast %cst_39 : f32 to vector<16x256xf32>
    %81 = arith.maximumf %79, %80 : vector<16x256xf32>
    %cst_40 = arith.constant dense<0.000000e+00> : vector<256xf32>
    %82 = vector.multi_reduction <add>, %81, %cst_40 [0] : vector<16x256xf32> to vector<256xf32>
    %83 = vector.shape_cast %82 : vector<256xf32> to vector<1x256xf32>
    %84 = arith.mulf %81, %81 : vector<16x256xf32>
    %cst_41 = arith.constant dense<0.000000e+00> : vector<256xf32>
    %85 = vector.multi_reduction <add>, %84, %cst_41 [0] : vector<16x256xf32> to vector<256xf32>
    %86 = vector.shape_cast %85 : vector<256xf32> to vector<1x256xf32>
    %cst_42 = arith.constant 6.250000e-02 : f32
    %87 = vector.broadcast %cst_42 : f32 to vector<1x256xf32>
    %88 = arith.mulf %83, %87 : vector<1x256xf32>
    %cst_43 = arith.constant 6.250000e-02 : f32
    %89 = vector.broadcast %cst_43 : f32 to vector<1x256xf32>
    %90 = arith.mulf %86, %89 : vector<1x256xf32>
    %91 = arith.mulf %88, %88 : vector<1x256xf32>
    %92 = arith.subf %90, %91 : vector<1x256xf32>
    %cst_44 = arith.constant 0.000000e+00 : f32
    %93 = vector.broadcast %cst_44 : f32 to vector<1x256xf32>
    %94 = arith.maximumf %92, %93 : vector<1x256xf32>
    %c0_45 = arith.constant 0 : index
    %c0_46 = arith.constant 0 : index
    %95 = vector.load %arg11[%c0_45, %c0_46] : memref<1x256xf32, #tpu.memory_space<vmem>>, vector<1x256xf32>
    %cst_47 = arith.constant 9.99999974E-6 : f32
    %96 = vector.broadcast %cst_47 : f32 to vector<1x256xf32>
    %97 = arith.addf %94, %96 : vector<1x256xf32>
    %98 = math.rsqrt %97 : vector<1x256xf32>
    %99 = arith.mulf %95, %98 : vector<1x256xf32>
    %c0_48 = arith.constant 0 : index
    %c0_49 = arith.constant 0 : index
    %100 = vector.load %arg12[%c0_48, %c0_49] : memref<1x256xf32, #tpu.memory_space<vmem>>, vector<1x256xf32>
    %101 = arith.mulf %88, %99 : vector<1x256xf32>
    %102 = arith.subf %100, %101 : vector<1x256xf32>
    %103 = vector.broadcast %99 : vector<1x256xf32> to vector<16x256xf32>
    %104 = arith.mulf %81, %103 : vector<16x256xf32>
    %105 = vector.broadcast %102 : vector<1x256xf32> to vector<16x256xf32>
    %106 = arith.addf %104, %105 : vector<16x256xf32>
    %c2_i32_50 = arith.constant 2 : i32
    %107 = tpu.memref_slice %arg19[%c2_i32_50] : memref<3x!tpu.dma_semaphore, #tpu.memory_space<semaphore_mem>> -> memref<1x!tpu.dma_semaphore, #tpu.memory_space<semaphore_mem>>
    %108 = tpu.memref_squeeze %107 : memref<1x!tpu.dma_semaphore, #tpu.memory_space<semaphore_mem>> -> memref<!tpu.dma_semaphore, #tpu.memory_space<semaphore_mem>>
    tpu.wait_dma2 semaphore(%108 : memref<!tpu.dma_semaphore, #tpu.memory_space<semaphore_mem>>) src(%arg13 : memref<256x128xf32, #tpu.memory_space<any>>) dst(%arg18 : memref<256x128xf32, #tpu.memory_space<vmem>>)
    %c0_51 = arith.constant 0 : index
    %c0_52 = arith.constant 0 : index
    %109 = vector.load %arg18[%c0_51, %c0_52] : memref<256x128xf32, #tpu.memory_space<vmem>>, vector<256x128xf32>
    %cst_53 = arith.constant dense<0.000000e+00> : vector<16x128xf32>
    %110 = tpu.matmul %106, %109, %cst_53 {dimension_numbers = #tpu.dot_dimension_numbers<[1], [0], [0], [1], [0, 0, 1, 1], [], []>} : vector<16x256xf32>, vector<256x128xf32>, vector<16x128xf32> -> vector<16x128xf32>
    %c0_54 = arith.constant 0 : index
    %c0_55 = arith.constant 0 : index
    %111 = vector.load %arg14[%c0_54, %c0_55] : memref<1x128xf32, #tpu.memory_space<vmem>>, vector<1x128xf32>
    %112 = vector.broadcast %111 : vector<1x128xf32> to vector<16x128xf32>
    %113 = arith.addf %110, %112 : vector<16x128xf32>
    %c0_56 = arith.constant 0 : index
    %c0_57 = arith.constant 0 : index
    %114 = vector.load %arg15[%c0_56, %c0_57] : memref<16x128xf32, #tpu.memory_space<vmem>>, vector<16x128xf32>
    tpu.vector_store %arg15[%c0_56, %c0_57], %113 {strides = array<i32>} : memref<16x128xf32, #tpu.memory_space<vmem>>, vector<16x128xf32>,
    return
  }
}

</mosaic_0001>

<llo_original>
// kernel: _forward_impl.1
$region0: #{_forward_impl.1}
  #allocation0 [shape = 'u32[]', space=smem, size = 0x4, offset = 0x4, fixed_abs, tag = 'smem constant byte address 0x4 - core index']
  #allocation1 [shape = 'u32[144,128]{1,0:T(1,128)}', space=vmem, size = 0x12000, scoped, tag = 'internal scratch']
  #allocation2 [shape = 'f32[256,512]{1,0:T(8,128)}', space=vmem, size = 0x80000, scoped, tag = 'scratch operand']
  #allocation3 [shape = 'f32[512,256]{1,0:T(8,128)}', space=vmem, size = 0x80000, scoped, tag = 'scratch operand']
  #allocation4 [shape = 'f32[256,128]{1,0:T(8,128)}', space=vmem, size = 0x20000, scoped, tag = 'scratch operand']
  #allocation5 [shape = 's32[3]{0}', space=sflag, size = 0xc, scoped, tag = 'scratch operand']
  #allocation8 [shape = 's32[]', space=sflag, size = 0x4, offset = 0, fixed_abs, tag = 'sflag constant byte address 0x0 - dummy sync flag']
  #allocation9 [shape = 's32[]', space=sflag, size = 0x4, offset = 0, fixed_abs, tag = 'sflag constant byte address 0x0 - dummy sync flag']
  #allocation10 [shape = 'u32[]', space=smem, size = 0x4, offset = 0x44, fixed_abs, tag = 'smem constant byte address 0x44 - assertion arg 0']
  #allocation11 [shape = 'u32[]', space=smem, size = 0x4, offset = 0x48, fixed_abs, tag = 'smem constant byte address 0x48 - assertion arg 1']
  #allocation12 [shape = 's32[]', space=sflag, size = 0x4, offset = 0, fixed_abs, tag = 'sflag constant byte address 0x0 - dummy sync flag']
  #allocation13 [shape = 's32[]', space=sflag, size = 0x4, offset = 0, fixed_abs, tag = 'sflag constant byte address 0x0 - dummy sync flag']
  #allocation14 [shape = 's32[]', space=sflag, size = 0x4, offset = 0, fixed_abs, tag = 'sflag constant byte address 0x0 - dummy sync flag']
  #allocation15 [shape = 's32[]', space=sflag, size = 0x4, offset = 0, fixed_abs, tag = 'sflag constant byte address 0x0 - dummy sync flag']
  %s0 = inlined_call_operand.vmem [shape: f32[16,8], index: 0, kind: input, shape index: {}]
  %s1 = inlined_call_operand.vmem [shape: f32[8,256], index: 1, kind: input, shape index: {}]
  %s2 = inlined_call_operand.vmem [shape: f32[1,256], index: 2, kind: input, shape index: {}]
  %s3 = inlined_call_operand.vmem [shape: f32[1,256], index: 3, kind: input, shape index: {}]
  %s4 = inlined_call_operand.vmem [shape: f32[1,256], index: 4, kind: input, shape index: {}]
  %s5 = inlined_call_operand.hbm [shape: f32[256,512], index: 5, kind: input, shape index: {}]
  %s6 = inlined_call_operand.vmem [shape: f32[1,512], index: 6, kind: input, shape index: {}]
  %s7 = inlined_call_operand.vmem [shape: f32[1,512], index: 7, kind: input, shape index: {}]
  %s8 = inlined_call_operand.vmem [shape: f32[1,512], index: 8, kind: input, shape index: {}]
  %s9 = inlined_call_operand.hbm [shape: f32[512,256], index: 9, kind: input, shape index: {}]
  %s10 = inlined_call_operand.vmem [shape: f32[1,256], index: 10, kind: input, shape index: {}]
  %s11 = inlined_call_operand.vmem [shape: f32[1,256], index: 11, kind: input, shape index: {}]
  %s12 = inlined_call_operand.vmem [shape: f32[1,256], index: 12, kind: input, shape index: {}]
  %s13 = inlined_call_operand.hbm [shape: f32[256,128], index: 13, kind: input, shape index: {}]
  %s14 = inlined_call_operand.vmem [shape: f32[1,128], index: 14, kind: input, shape index: {}]
  %s15 = inlined_call_operand.hbm [shape: f32[16,128], index: 15, kind: output, shape index: {}]
  %s16 = sld [smem:[#allocation0]]
  $region70: #{_forward_impl.1} parent=0
    _
  %s18 = ssub.s32 1, %s16
  %s19 = scalar_select 0, %s18, %s16
  $region1: #{_forward_impl.1} parent=0
    #allocation6 [shape = 'u8[8192]{0}', space=vmem, size = 0x2000, scoped, tag = 'output window, operand 0, single buffered']
    #allocation7 [shape = 's32[1]{0}', space=sflag, size = 0x4, scoped, tag = 'scoped memory for _forward_impl.1']
    %20 = vsyncpa [#allocation7], 0
    // Predicated region
    $region2: #{_forward_impl.1} parent=1 // pred_check
      _
    $region3: #{_forward_impl.1} parent=1 // pred_check_branch
      %22 = sbr.rel (0) target = $region5
    $region4: #{_forward_impl.1} parent=1 // pred_region
      _
    $region5: #{_forward_impl.1} parent=1 // pred_fallthru
      _
    // Predicated region
    $region6: #{_forward_impl.1} parent=1 // pred_check
      _
    $region7: #{_forward_impl.1} parent=1 // pred_check_branch
      %24 = sbr.rel (0) target = $region9
    $region8: #{_forward_impl.1} parent=1 // pred_region
      _
    $region9: #{_forward_impl.1} parent=1 // pred_fallthru
      _
    // Predicated region
    $region10: #{_forward_impl.1} parent=1 // pred_check
      _
    $region11: #{_forward_impl.1} parent=1 // pred_check_branch
      %26 = sbr.rel (0) target = $region13
    $region12: #{_forward_impl.1} parent=1 // pred_region
      _
    $region13: #{_forward_impl.1} parent=1 // pred_fallthru
      _
    // Predicated region
    $region14: #{_forward_impl.1} parent=1 // pred_check
      _
    $region15: #{_forward_impl.1} parent=1 // pred_check_branch
      %28 = sbr.rel (0) target = $region17
    $region16: #{_forward_impl.1} parent=1 // pred_region
      _
    $region17: #{_forward_impl.1} parent=1 // pred_fallthru
      _
    // Predicated region
    $region18: #{_forward_impl.1} parent=1 // pred_check
      _
    $region19: #{_forward_impl.1} parent=1 // pred_check_branch
      %30 = sbr.rel (0) target = $region21
    $region20: #{_forward_impl.1} parent=1 // pred_region
      _
    $region21: #{_forward_impl.1} parent=1 // pred_fallthru
      _
    // Predicated region
    $region22: #{_forward_impl.1} parent=1 // pred_check
      _
    $region23: #{_forward_impl.1} parent=1 // pred_check_branch
      %32 = sbr.rel (0) target = $region25
    $region24: #{_forward_impl.1} parent=1 // pred_region
      _
    $region25: #{_forward_impl.1} parent=1 // pred_fallthru
      _
    // Predicated region
    $region26: #{_forward_impl.1} parent=1 // pred_check
      _
    $region27: #{_forward_impl.1} parent=1 // pred_check_branch
      %34 = sbr.rel (0) target = $region29
    $region28: #{_forward_impl.1} parent=1 // pred_region
      _
    $region29: #{_forward_impl.1} parent=1 // pred_fallthru
      _
    // Predicated region
    $region30: #{_forward_impl.1} parent=1 // pred_check
      _
    $region31: #{_forward_impl.1} parent=1 // pred_check_branch
      %36 = sbr.rel (0) target = $region33
    $region32: #{_forward_impl.1} parent=1 // pred_region
      _
    $region33: #{_forward_impl.1} parent=1 // pred_fallthru
      _
    // Predicated region
    $region34: #{_forward_impl.1} parent=1 // pred_check
      _
    $region35: #{_forward_impl.1} parent=1 // pred_check_branch
      %38 = sbr.rel (0) target = $region37
    $region36: #{_forward_impl.1} parent=1 // pred_region
      _
    $region37: #{_forward_impl.1} parent=1 // pred_fallthru
      _
    // Predicated region
    $region38: #{_forward_impl.1} parent=1 // pred_check
      _
    $region39: #{_forward_impl.1} parent=1 // pred_check_branch
      %40 = sbr.rel (0) target = $region41
    $region40: #{_forward_impl.1} parent=1 // pred_region
      _
    $region41: #{_forward_impl.1} parent=1 // pred_fallthru
      _
    // Predicated region
    $region42: #{_forward_impl.1} parent=1 // pred_check
      _
    $region43: #{_forward_impl.1} parent=1 // pred_check_branch
      %42 = sbr.rel (0) target = $region45
    $region44: #{_forward_impl.1} parent=1 // pred_region
      _
    $region45: #{_forward_impl.1} parent=1 // pred_fallthru
      _
    // Predicated region
    $region46: #{_forward_impl.1} parent=1 // pred_check
      _
    $region47: #{_forward_impl.1} parent=1 // pred_check_branch
      %44 = sbr.rel (0) target = $region49
    $region48: #{_forward_impl.1} parent=1 // pred_region
      _
    $region49: #{_forward_impl.1} parent=1 // pred_fallthru
      _
    // Predicated region
    $region50: #{_forward_impl.1} parent=1 // pred_check
      _
    $region51: #{_forward_impl.1} parent=1 // pred_check_branch
      %46 = sbr.rel target = $region53
    $region52: #{_forward_impl.1} parent=1 // pred_region
      %47 = sst [smem:[#allocation10]] [#allocation9]
      %48 = sst [smem:[#allocation11]] [#allocation8]
    $region53: #{_forward_impl.1} parent=1 // pred_fallthru
      _
    %50 = shalt.err (0)
    %s52 = sshll.u32 [#allocation2], 4
    %s53 = int_to_ptr.vmem [resolvable:$true] %s52
    %55 = dma.hbm_to_vmem [thread:$0]  %s5, 16384, %s53, [#allocation5]
    %s56 = scalar_lea.sflag [#allocation5], 1
    // Predicated region
    $region54: #{_forward_impl.1} parent=1 // pred_check
      _
    $region55: #{_forward_impl.1} parent=1 // pred_check_branch
      %58 = sbr.rel target = $region57
    $region56: #{_forward_impl.1} parent=1 // pred_region
      %59 = sst [smem:[#allocation10]] [#allocation13]
      %60 = sst [smem:[#allocation11]] [#allocation12]
    $region57: #{_forward_impl.1} parent=1 // pred_fallthru
      _
    %62 = shalt.err (0)
    %s64 = sshll.u32 [#allocation3], 4
    %s65 = int_to_ptr.vmem [resolvable:$true] %s64
    %67 = dma.hbm_to_vmem [thread:$0]  %s9, 16384, %s65, %s56
    %s68 = scalar_lea.sflag [#allocation5], 2
    // Predicated region
    $region58: #{_forward_impl.1} parent=1 // pred_check
      _
    $region59: #{_forward_impl.1} parent=1 // pred_check_branch
      %70 = sbr.rel target = $region61
    $region60: #{_forward_impl.1} parent=1 // pred_region
      %71 = sst [smem:[#allocation10]] [#allocation15]
      %72 = sst [smem:[#allocation11]] [#allocation14]
    $region61: #{_forward_impl.1} parent=1 // pred_fallthru
      _
    %74 = shalt.err (0)
    %s76 = sshll.u32 [#allocation4], 4
    %s77 = int_to_ptr.vmem [resolvable:$true] %s76
    %79 = dma.hbm_to_vmem [thread:$0]  %s13, 4096, %s77, %s68
    %v80 = vld [vmem:[%s0] sm:$0xff]
    %v81 = vld [vmem:[%s0 + $0x8] sm:$0xff]
    %v82 = vld [vmem:[%s1] sm:$0xff]
    %v83 = vld [vmem:[%s1 + $0x8] sm:$0xff]
    %v84 = vld [vmem:[%s2] sm:$0x3]
    %v86 = vlaneseq
    %v87 = vshrl.u32 %v86, 7
    %v88 = vsub.s32 0, %v87
    %v89 = vrot.slane %v84, %v88
    %v90 = vlaneseq
    %v91 = vshrl.u32 %v90, 7
    %v92 = vsub.s32 1, %v91
    %v93 = vrot.slane %v84, %v92
    %vm96 = vcmask 64512
    %v98 = vsel %vm96, %v80, 0
    %v101 = vsel %vm96, %v81, 0
    %103 = vmatprep.subr.mxu0 %v83
    %104 = vmatpush1.msra.mxu0 %v82
    %105 = vmatprep.subr.mxu0 0.0
    %106 = vmatpush1.msra.mxu0 0.0
    %107 = vmatprep.subr.mxu0 0.0
    %108 = vmatpush1.msra.mxu0 0.0
    %109 = vmatprep.subr.mxu0 0.0
    %110 = vmatpush1.msra.mxu0 0.0
    %111 = vmatprep.subr.mxu0 0.0
    %112 = vmatpush1.msra.mxu0 0.0
    %113 = vmatprep.subr.mxu0 0.0
    %114 = vmatpush1.msra.mxu0 0.0
    %115 = vmatprep.subr.mxu0 0.0
    %116 = vmatpush1.msra.mxu0 0.0
    %117 = vmatprep.subr.mxu0 0.0
    %118 = vmatpush1.msra.mxu0 0.0
    %119 = vmatprep.subr.mxu0 0.0
    %120 = vmatpush1.msra.mxu0 0.0
    %121 = vmatprep.subr.mxu0 0.0
    %122 = vmatpush1.msra.mxu0 0.0
    %123 = vmatprep.subr.mxu0 0.0
    %124 = vmatpush1.msra.mxu0 0.0
    %125 = vmatprep.subr.mxu0 0.0
    %126 = vmatpush1.msra.mxu0 0.0
    %127 = vmatprep.subr.mxu0 0.0
    %128 = vmatpush1.msra.mxu0 0.0
    %129 = vmatprep.subr.mxu0 0.0
    %130 = vmatpush1.msra.mxu0 0.0
    %131 = vmatprep.subr.mxu0 0.0
    %132 = vmatpush1.msra.mxu0 0.0
    %133 = vmatprep.subr.mxu0 0.0
    %134 = vmatpush1.msra.mxu0 0.0
    %135 = vmatprep.subr.mxu0 0.0
    %136 = vmatpush1.msra.mxu0 0.0
    %137 = vmatprep.subr.mxu0 0.0
    %138 = vmatpush1.msra.mxu0 0.0
    %139 = vmatprep.subr.mxu0 0.0
    %140 = vmatpush1.msra.mxu0 0.0
    %141 = vmatprep.subr.mxu0 0.0
    %142 = vmatpush1.msra.mxu0 0.0
    %143 = vmatprep.subr.mxu0 0.0
    %144 = vmatpush1.msra.mxu0 0.0
    %145 = vmatprep.subr.mxu0 0.0
    %146 = vmatpush1.msra.mxu0 0.0
    %147 = vmatprep.subr.mxu0 0.0
    %148 = vmatpush1.msra.mxu0 0.0
    %149 = vmatprep.subr.mxu0 0.0
    %150 = vmatpush1.msra.mxu0 0.0
    %151 = vmatprep.subr.mxu0 0.0
    %152 = vmatpush1.msra.mxu0 0.0
    %153 = vmatprep.subr.mxu0 0.0
    %154 = vmatpush1.msra.mxu0 0.0
    %155 = vmatprep.subr.mxu0 0.0
    %156 = vmatpush1.msra.mxu0 0.0
    %157 = vmatprep.subr.mxu0 0.0
    %158 = vmatpush1.msra.mxu0 0.0
    %159 = vmatprep.subr.mxu0 0.0
    %160 = vmatpush1.msra.mxu0 0.0
    %161 = vmatprep.subr.mxu0 0.0
    %162 = vmatpush1.msra.mxu0 0.0
    %163 = vmatprep.subr.mxu0 0.0
    %164 = vmatpush1.msra.mxu0 0.0
    %165 = vmatprep.subr.mxu0 0.0
    %166 = vmatpush1.msra.mxu0 0.0
    %167 = vmatprep.mubr.f32.mxu0 0.0
    %168 = vmatmul.mubr.f32.gmra.mrb[0].mxu0 %v98
    %v169 = vpop.f32.mrb[0].mxu0
    %v170 = vadd.f32 %v89, %v169
    %v171 = vpop.f32.mrb[0].mxu0
    %v172 = vadd.f32 %v93, %v171
    %173 = vmatprep.mubr.f32.mxu0 0.0
    %174 = vmatmul.mubr.f32.gmra.mrb[0].mxu0 %v101
    %v175 = vpop.f32.mrb[0].mxu0
    %v176 = vadd.f32 %v89, %v175
    %v177 = vpop.f32.mrb[0].mxu0
    %v178 = vadd.f32 %v93, %v177
    %179 = vdwg.mxu0
    %v180 = vmax.f32 %v170, 0.0
    %v181 = vmax.f32 %v172, 0.0
    %v182 = vmax.f32 %v176, 0.0
    %v183 = vmax.f32 %v178, 0.0
    %v184 = vadd.f32 %v180, %v182
    %v185 = vrot.slane %v184, 4
    %v186 = vadd.f32 %v184, %v185
    %v187 = vrot.slane %v186, 2
    %v188 = vadd.f32 %v186, %v187
    %v189 = vrot.slane %v188, 1
    %v190 = vadd.f32 %v188, %v189
    %v191 = vadd.f32 %v181, %v183
    %v192 = vrot.slane %v191, 4
    %v193 = vadd.f32 %v191, %v192
    %v194 = vrot.slane %v193, 2
    %v195 = vadd.f32 %v193, %v194
    %v196 = vrot.slane %v195, 1
    %v197 = vadd.f32 %v195, %v196
    %v198 = vmul.f32 %v180, %v180
    %v199 = vmul.f32 %v181, %v181
    %v200 = vmul.f32 %v182, %v182
    %v201 = vmul.f32 %v183, %v183
    %v202 = vadd.f32 %v198, %v200
    %v203 = vrot.slane %v202, 4
    %v204 = vadd.f32 %v202, %v203
    %v205 = vrot.slane %v204, 2
    %v206 = vadd.f32 %v204, %v205
    %v207 = vrot.slane %v206, 1
    %v208 = vadd.f32 %v206, %v207
    %v209 = vadd.f32 %v199, %v201
    %v210 = vrot.slane %v209, 4
    %v211 = vadd.f32 %v209, %v210
    %v212 = vrot.slane %v211, 2
    %v213 = vadd.f32 %v211, %v212
    %v214 = vrot.slane %v213, 1
    %v215 = vadd.f32 %v213, %v214
    %v216 = vmul.f32 %v190, 0.0625
    %v217 = vmul.f32 %v197, 0.0625
    %v218 = vmul.f32 %v208, 0.0625
    %v219 = vmul.f32 %v215, 0.0625
    %v220 = vmul.f32 %v216, %v216
    %v221 = vmul.f32 %v217, %v217
    %v222 = vsub.f32 %v218, %v220
    %v223 = vsub.f32 %v219, %v221
    %v224 = vmax.f32 %v222, 0.0
    %v225 = vmax.f32 %v223, 0.0
    %v226 = vld [vmem:[%s3] sm:$0x3]
    %v227 = vadd.f32 %v224, 1e-05
    %v228 = vadd.f32 %v225, 1e-05
    %v229 = vrsqrt.pop %v227
    %v230 = vrsqrt.pop %v228
    %v233 = vcombine.low %v229, %v230
    %v235 = vunpack.c.l.s4 1966171168
    %v236 = vunpack.c.0.s8 %v235
    %v237 = vlaneseq
    %v238 = vshrl.u32 %v237, 7
    %v239 = vsub.s32 %v236, %v238
    %v240 = vrot.slane %v233, %v239
    %v242 = vunpack.c.l.s4 1966171168
    %v243 = vunpack.c.0.s8 %v242
    %v244 = vlaneseq
    %v245 = vshrl.u32 %v244, 7
    %v246 = vsub.s32 %v243, %v245
    %v247 = vrot.slane %v240, %v246
    %v249 = vmul.f32 %v226, %v247
    %v250 = vld [vmem:[%s4] sm:$0x3]
    %v252 = vlaneseq
    %v253 = vshrl.u32 %v252, 7
    %v254 = vsub.s32 0, %v253
    %v255 = vrot.slane %v249, %v254
    %v256 = vlaneseq
    %v257 = vshrl.u32 %v256, 7
    %v258 = vsub.s32 1, %v257
    %v259 = vrot.slane %v249, %v258
    %v262 = vmul.f32 %v216, %v255
    %v263 = vmul.f32 %v217, %v259
    %v266 = vcombine.low %v262, %v263
    %v268 = vunpack.c.l.s4 1966171168
    %v269 = vunpack.c.0.s8 %v268
    %v270 = vlaneseq
    %v271 = vshrl.u32 %v270, 7
    %v272 = vsub.s32 %v269, %v271
    %v273 = vrot.slane %v266, %v272
    %v275 = vunpack.c.l.s4 1966171168
    %v276 = vunpack.c.0.s8 %v275
    %v277 = vlaneseq
    %v278 = vshrl.u32 %v277, 7
    %v279 = vsub.s32 %v276, %v278
    %v280 = vrot.slane %v273, %v279
    %v282 = vsub.f32 %v250, %v280
    %v283 = vmul.f32 %v180, %v255
    %v284 = vmul.f32 %v181, %v259
    %v285 = vmul.f32 %v182, %v255
    %v286 = vmul.f32 %v183, %v259
    %v288 = vlaneseq
    %v289 = vshrl.u32 %v288, 7
    %v290 = vsub.s32 0, %v289
    %v291 = vrot.slane %v282, %v290
    %v292 = vlaneseq
    %v293 = vshrl.u32 %v292, 7
    %v294 = vsub.s32 1, %v293
    %v295 = vrot.slane %v282, %v294
    %v298 = vadd.f32 %v283, %v291
    %v299 = vadd.f32 %v284, %v295
    %v300 = vadd.f32 %v285, %v291
    %v301 = vadd.f32 %v286, %v295
    %s302 = smul.u32 8, 32
    %s303 = smul.u32 %s302, 4
    %s304 = sshll.u32 %s303, 4
    %305 = dma.done [#allocation5], %s304
    %v306 = vld [vmem:[#allocation2] sm:$0xff]
    %v307 = vld [vmem:[#allocation2 + $0x8] sm:$0xff]
    %v308 = vld [vmem:[#allocation2 + $0x10] sm:$0xff]
    %v309 = vld [vmem:[#allocation2 + $0x18] sm:$0xff]
    %v310 = vld [vmem:[#allocation2 + $0x20] sm:$0xff]
    %v311 = vld [vmem:[#allocation2 + $0x28] sm:$0xff]
    %v312 = vld [vmem:[#allocation2 + $0x30] sm:$0xff]
    %v313 = vld [vmem:[#allocation2 + $0x38] sm:$0xff]
    %v314 = vld [vmem:[#allocation2 + $0x40] sm:$0xff]
    %v315 = vld [vmem:[#allocation2 + $0x48] sm:$0xff]
    %v316 = vld [vmem:[#allocation2 + $0x50] sm:$0xff]
    %v317 = vld [vmem:[#allocation2 + $0x58] sm:$0xff]
    %v318 = vld [vmem:[#allocation2 + $0x60] sm:$0xff]
    %v319 = vld [vmem:[#allocation2 + $0x68] sm:$0xff]
    %v320 = vld [vmem:[#allocation2 + $0x70] sm:$0xff]
    %v321 = vld [vmem:[#allocation2 + $0x78] sm:$0xff]
    %v322 = vld [vmem:[#allocation2 + $0x80] sm:$0xff]
    %v323 = vld [vmem:[#allocation2 + $0x88] sm:$0xff]
    %v324 = vld [vmem:[#allocation2 + $0x90] sm:$0xff]
    %v325 = vld [vmem:[#allocation2 + $0x98] sm:$0xff]
    %v326 = vld [vmem:[#allocation2 + $0xa0] sm:$0xff]
    %v327 = vld [vmem:[#allocation2 + $0xa8] sm:$0xff]
    %v328 = vld [vmem:[#allocation2 + $0xb0] sm:$0xff]
    %v329 = vld [vmem:[#allocation2 + $0xb8] sm:$0xff]
    %v330 = vld [vmem:[#allocation2 + $0xc0] sm:$0xff]
    %v331 = vld [vmem:[#allocation2 + $0xc8] sm:$0xff]
    %v332 = vld [vmem:[#allocation2 + $0xd0] sm:$0xff]
    %v333 = vld [vmem:[#allocation2 + $0xd8] sm:$0xff]
    %v334 = vld [vmem:[#allocation2 + $0xe0] sm:$0xff]
    %v335 = vld [vmem:[#allocation2 + $0xe8] sm:$0xff]
    %v336 = vld [vmem:[#allocation2 + $0xf0] sm:$0xff]
    %v337 = vld [vmem:[#allocation2 + $0xf8] sm:$0xff]
    %v338 = vld [vmem:[#allocation2 + $0x100] sm:$0xff]
    %v339 = vld [vmem:[#allocation2 + $0x108] sm:$0xff]
    %v340 = vld [vmem:[#allocation2 + $0x110] sm:$0xff]
    %v341 = vld [vmem:[#allocation2 + $0x118] sm:$0xff]
    %v342 = vld [vmem:[#allocation2 + $0x120] sm:$0xff]
    %v343 = vld [vmem:[#allocation2 + $0x128] sm:$0xff]
    %v344 = vld [vmem:[#allocation2 + $0x130] sm:$0xff]
    %v345 = vld [vmem:[#allocation2 + $0x138] sm:$0xff]
    %v346 = vld [vmem:[#allocation2 + $0x140] sm:$0xff]
    %v347 = vld [vmem:[#allocation2 + $0x148] sm:$0xff]
    %v348 = vld [vmem:[#allocation2 + $0x150] sm:$0xff]
    %v349 = vld [vmem:[#allocation2 + $0x158] sm:$0xff]
    %v350 = vld [vmem:[#allocation2 + $0x160] sm:$0xff]
    %v351 = vld [vmem:[#allocation2 + $0x168] sm:$0xff]
    %v352 = vld [vmem:[#allocation2 + $0x170] sm:$0xff]
    %v353 = vld [vmem:[#allocation2 + $0x178] sm:$0xff]
    %v354 = vld [vmem:[#allocation2 + $0x180] sm:$0xff]
    %v355 = vld [vmem:[#allocation2 + $0x188] sm:$0xff]
    %v356 = vld [vmem:[#allocation2 + $0x190] sm:$0xff]
    %v357 = vld [vmem:[#allocation2 + $0x198] sm:$0xff]
    %v358 = vld [vmem:[#allocation2 + $0x1a0] sm:$0xff]
    %v359 = vld [vmem:[#allocation2 + $0x1a8] sm:$0xff]
    %v360 = vld [vmem:[#allocation2 + $0x1b0] sm:$0xff]
    %v361 = vld [vmem:[#allocation2 + $0x1b8] sm:$0xff]
    %v362 = vld [vmem:[#allocation2 + $0x1c0] sm:$0xff]
    %v363 = vld [vmem:[#allocation2 + $0x1c8] sm:$0xff]
    %v364 = vld [vmem:[#allocation2 + $0x1d0] sm:$0xff]
    %v365 = vld [vmem:[#allocation2 + $0x1d8] sm:$0xff]
    %v366 = vld [vmem:[#allocation2 + $0x1e0] sm:$0xff]
    %v367 = vld [vmem:[#allocation2 + $0x1e8] sm:$0xff]
    %v368 = vld [vmem:[#allocation2 + $0x1f0] sm:$0xff]
    %v369 = vld [vmem:[#allocation2 + $0x1f8] sm:$0xff]
    %v370 = vld [vmem:[#allocation2 + $0x200] sm:$0xff]
    %v371 = vld [vmem:[#allocation2 + $0x208] sm:$0xff]
    %v372 = vld [vmem:[#allocation2 + $0x210] sm:$0xff]
    %v373 = vld [vmem:[#allocation2 + $0x218] sm:$0xff]
    %v374 = vld [vmem:[#allocation2 + $0x220] sm:$0xff]
    %v375 = vld [vmem:[#allocation2 + $0x228] sm:$0xff]
    %v376 = vld [vmem:[#allocation2 + $0x230] sm:$0xff]
    %v377 = vld [vmem:[#allocation2 + $0x238] sm:$0xff]
    %v378 = vld [vmem:[#allocation2 + $0x240] sm:$0xff]
    %v379 = vld [vmem:[#allocation2 + $0x248] sm:$0xff]
    %v380 = vld [vmem:[#allocation2 + $0x250] sm:$0xff]
    %v381 = vld [vmem:[#allocation2 + $0x258] sm:$0xff]
    %v382 = vld [vmem:[#allocation2 + $0x260] sm:$0xff]
    %v383 = vld [vmem:[#allocation2 + $0x268] sm:$0xff]
    %v384 = vld [vmem:[#allocation2 + $0x270] sm:$0xff]
    %v385 = vld [vmem:[#allocation2 + $0x278] sm:$0xff]
    %v386 = vld [vmem:[#allocation2 + $0x280] sm:$0xff]
    %v387 = vld [vmem:[#allocation2 + $0x288] sm:$0xff]
    %v388 = vld [vmem:[#allocation2 + $0x290] sm:$0xff]
    %v389 = vld [vmem:[#allocation2 + $0x298] sm:$0xff]
    %v390 = vld [vmem:[#allocation2 + $0x2a0] sm:$0xff]
    %v391 = vld [vmem:[#allocation2 + $0x2a8] sm:$0xff]
    %v392 = vld [vmem:[#allocation2 + $0x2b0] sm:$0xff]
    %v393 = vld [vmem:[#allocation2 + $0x2b8] sm:$0xff]
    %v394 = vld [vmem:[#allocation2 + $0x2c0] sm:$0xff]
    %v395 = vld [vmem:[#allocation2 + $0x2c8] sm:$0xff]
    %v396 = vld [vmem:[#allocation2 + $0x2d0] sm:$0xff]
    %v397 = vld [vmem:[#allocation2 + $0x2d8] sm:$0xff]
    %v398 = vld [vmem:[#allocation2 + $0x2e0] sm:$0xff]
    %v399 = vld [vmem:[#allocation2 + $0x2e8] sm:$0xff]
    %v400 = vld [vmem:[#allocation2 + $0x2f0] sm:$0xff]
    %v401 = vld [vmem:[#allocation2 + $0x2f8] sm:$0xff]
    %v402 = vld [vmem:[#allocation2 + $0x300] sm:$0xff]
    %v403 = vld [vmem:[#allocation2 + $0x308] sm:$0xff]
    %v404 = vld [vmem:[#allocation2 + $0x310] sm:$0xff]
    %v405 = vld [vmem:[#allocation2 + $0x318] sm:$0xff]
    %v406 = vld [vmem:[#allocation2 + $0x320] sm:$0xff]
    %v407 = vld [vmem:[#allocation2 + $0x328] sm:$0xff]
    %v408 = vld [vmem:[#allocation2 + $0x330] sm:$0xff]
    %v409 = vld [vmem:[#allocation2 + $0x338] sm:$0xff]
    %v410 = vld [vmem:[#allocation2 + $0x340] sm:$0xff]
    %v411 = vld [vmem:[#allocation2 + $0x348] sm:$0xff]
    %v412 = vld [vmem:[#allocation2 + $0x350] sm:$0xff]
    %v413 = vld [vmem:[#allocation2 + $0x358] sm:$0xff]
    %v414 = vld [vmem:[#allocation2 + $0x360] sm:$0xff]
    %v415 = vld [vmem:[#allocation2 + $0x368] sm:$0xff]
    %v416 = vld [vmem:[#allocation2 + $0x370] sm:$0xff]
    %v417 = vld [vmem:[#allocation2 + $0x378] sm:$0xff]
    %v418 = vld [vmem:[#allocation2 + $0x380] sm:$0xff]
    %v419 = vld [vmem:[#allocation2 + $0x388] sm:$0xff]
    %v420 = vld [vmem:[#allocation2 + $0x390] sm:$0xff]
    %v421 = vld [vmem:[#allocation2 + $0x398] sm:$0xff]
    %v422 = vld [vmem:[#allocation2 + $0x3a0] sm:$0xff]
    %v423 = vld [vmem:[#allocation2 + $0x3a8] sm:$0xff]
    %v424 = vld [vmem:[#allocation2 + $0x3b0] sm:$0xff]
    %v425 = vld [vmem:[#allocation2 + $0x3b8] sm:$0xff]
    %v426 = vld [vmem:[#allocation2 + $0x3c0] sm:$0xff]
    %v427 = vld [vmem:[#allocation2 + $0x3c8] sm:$0xff]
    %v428 = vld [vmem:[#allocation2 + $0x3d0] sm:$0xff]
    %v429 = vld [vmem:[#allocation2 + $0x3d8] sm:$0xff]
    %v430 = vld [vmem:[#allocation2 + $0x3e0] sm:$0xff]
    %v431 = vld [vmem:[#allocation2 + $0x3e8] sm:$0xff]
    %v432 = vld [vmem:[#allocation2 + $0x3f0] sm:$0xff]
    %v433 = vld [vmem:[#allocation2 + $0x3f8] sm:$0xff]
    %v434 = vld [vmem:[%s6] sm:$0xf]
    %v436 = vlaneseq
    %v437 = vshrl.u32 %v436, 7
    %v438 = vsub.s32 0, %v437
    %v439 = vrot.slane %v434, %v438
    %v440 = vlaneseq
    %v441 = vshrl.u32 %v440, 7
    %v442 = vsub.s32 1, %v441
    %v443 = vrot.slane %v434, %v442
    %v444 = vlaneseq
    %v445 = vshrl.u32 %v444, 7
    %v446 = vsub.s32 2, %v445
    %v447 = vrot.slane %v434, %v446
    %v448 = vlaneseq
    %v449 = vshrl.u32 %v448, 7
    %v450 = vsub.s32 3, %v449
    %v451 = vrot.slane %v434, %v450
    %456 = vmatprep.subr.mxu0 %v307
    %457 = vmatpush1.msra.mxu0 %v306
    %458 = vmatprep.subr.mxu0 %v311
    %459 = vmatpush1.msra.mxu0 %v310
    %460 = vmatprep.subr.mxu0 %v315
    %461 = vmatpush1.msra.mxu0 %v314
    %462 = vmatprep.subr.mxu0 %v319
    %463 = vmatpush1.msra.mxu0 %v318
    %464 = vmatprep.subr.mxu0 %v323
    %465 = vmatpush1.msra.mxu0 %v322
    %466 = vmatprep.subr.mxu0 %v327
    %467 = vmatpush1.msra.mxu0 %v326
    %468 = vmatprep.subr.mxu0 %v331
    %469 = vmatpush1.msra.mxu0 %v330
    %470 = vmatprep.subr.mxu0 %v335
    %471 = vmatpush1.msra.mxu0 %v334
    %472 = vmatprep.subr.mxu0 %v339
    %473 = vmatpush1.msra.mxu0 %v338
    %474 = vmatprep.subr.mxu0 %v343
    %475 = vmatpush1.msra.mxu0 %v342
    %476 = vmatprep.subr.mxu0 %v347
    %477 = vmatpush1.msra.mxu0 %v346
    %478 = vmatprep.subr.mxu0 %v351
    %479 = vmatpush1.msra.mxu0 %v350
    %480 = vmatprep.subr.mxu0 %v355
    %481 = vmatpush1.msra.mxu0 %v354
    %482 = vmatprep.subr.mxu0 %v359
    %483 = vmatpush1.msra.mxu0 %v358
    %484 = vmatprep.subr.mxu0 %v363
    %485 = vmatpush1.msra.mxu0 %v362
    %486 = vmatprep.subr.mxu0 %v367
    %487 = vmatpush1.msra.mxu0 %v366
    %488 = vmatprep.subr.mxu0 %v371
    %489 = vmatpush1.msra.mxu0 %v370
    %490 = vmatprep.subr.mxu0 %v375
    %491 = vmatpush1.msra.mxu0 %v374
    %492 = vmatprep.subr.mxu0 %v379
    %493 = vmatpush1.msra.mxu0 %v378
    %494 = vmatprep.subr.mxu0 %v383
    %495 = vmatpush1.msra.mxu0 %v382
    %496 = vmatprep.subr.mxu0 %v387
    %497 = vmatpush1.msra.mxu0 %v386
    %498 = vmatprep.subr.mxu0 %v391
    %499 = vmatpush1.msra.mxu0 %v390
    %500 = vmatprep.subr.mxu0 %v395
    %501 = vmatpush1.msra.mxu0 %v394
    %502 = vmatprep.subr.mxu0 %v399
    %503 = vmatpush1.msra.mxu0 %v398
    %504 = vmatprep.subr.mxu0 %v403
    %505 = vmatpush1.msra.mxu0 %v402
    %506 = vmatprep.subr.mxu0 %v407
    %507 = vmatpush1.msra.mxu0 %v406
    %508 = vmatprep.subr.mxu0 %v411
    %509 = vmatpush1.msra.mxu0 %v410
    %510 = vmatprep.subr.mxu0 %v415
    %511 = vmatpush1.msra.mxu0 %v414
    %512 = vmatprep.subr.mxu0 %v419
    %513 = vmatpush1.msra.mxu0 %v418
    %514 = vmatprep.subr.mxu0 %v423
    %515 = vmatpush1.msra.mxu0 %v422
    %516 = vmatprep.subr.mxu0 %v427
    %517 = vmatpush1.msra.mxu0 %v426
    %518 = vmatprep.subr.mxu0 %v431
    %519 = vmatpush1.msra.mxu0 %v430
    %520 = vmatprep.mubr.f32.mxu0 %v299
    %521 = vmatmul.mubr.f32.gmra.mrb[0].mxu0 %v298
    %v522 = vpop.f32.mrb[0].mxu0
    %v523 = vadd.f32 %v439, %v522
    %v524 = vpop.f32.mrb[0].mxu0
    %v525 = vadd.f32 %v443, %v524
    %526 = vmatprep.mubr.f32.mxu0 %v301
    %527 = vmatmul.mubr.f32.gmra.mrb[0].mxu0 %v300
    %v528 = vpop.f32.mrb[0].mxu0
    %v529 = vadd.f32 %v439, %v528
    %v530 = vpop.f32.mrb[0].mxu0
    %v531 = vadd.f32 %v443, %v530
    %532 = vdwg.mxu0
    %533 = vmatprep.subr.mxu0 %v309
    %534 = vmatpush1.msra.mxu0 %v308
    %535 = vmatprep.subr.mxu0 %v313
    %536 = vmatpush1.msra.mxu0 %v312
    %537 = vmatprep.subr.mxu0 %v317
    %538 = vmatpush1.msra.mxu0 %v316
    %539 = vmatprep.subr.mxu0 %v321
    %540 = vmatpush1.msra.mxu0 %v320
    %541 = vmatprep.subr.mxu0 %v325
    %542 = vmatpush1.msra.mxu0 %v324
    %543 = vmatprep.subr.mxu0 %v329
    %544 = vmatpush1.msra.mxu0 %v328
    %545 = vmatprep.subr.mxu0 %v333
    %546 = vmatpush1.msra.mxu0 %v332
    %547 = vmatprep.subr.mxu0 %v337
    %548 = vmatpush1.msra.mxu0 %v336
    %549 = vmatprep.subr.mxu0 %v341
    %550 = vmatpush1.msra.mxu0 %v340
    %551 = vmatprep.subr.mxu0 %v345
    %552 = vmatpush1.msra.mxu0 %v344
    %553 = vmatprep.subr.mxu0 %v349
    %554 = vmatpush1.msra.mxu0 %v348
    %555 = vmatprep.subr.mxu0 %v353
    %556 = vmatpush1.msra.mxu0 %v352
    %557 = vmatprep.subr.mxu0 %v357
    %558 = vmatpush1.msra.mxu0 %v356
    %559 = vmatprep.subr.mxu0 %v361
    %560 = vmatpush1.msra.mxu0 %v360
    %561 = vmatprep.subr.mxu0 %v365
    %562 = vmatpush1.msra.mxu0 %v364
    %563 = vmatprep.subr.mxu0 %v369
    %564 = vmatpush1.msra.mxu0 %v368
    %565 = vmatprep.subr.mxu0 %v373
    %566 = vmatpush1.msra.mxu0 %v372
    %567 = vmatprep.subr.mxu0 %v377
    %568 = vmatpush1.msra.mxu0 %v376
    %569 = vmatprep.subr.mxu0 %v381
    %570 = vmatpush1.msra.mxu0 %v380
    %571 = vmatprep.subr.mxu0 %v385
    %572 = vmatpush1.msra.mxu0 %v384
    %573 = vmatprep.subr.mxu0 %v389
    %574 = vmatpush1.msra.mxu0 %v388
    %575 = vmatprep.subr.mxu0 %v393
    %576 = vmatpush1.msra.mxu0 %v392
    %577 = vmatprep.subr.mxu0 %v397
    %578 = vmatpush1.msra.mxu0 %v396
    %579 = vmatprep.subr.mxu0 %v401
    %580 = vmatpush1.msra.mxu0 %v400
    %581 = vmatprep.subr.mxu0 %v405
    %582 = vmatpush1.msra.mxu0 %v404
    %583 = vmatprep.subr.mxu0 %v409
    %584 = vmatpush1.msra.mxu0 %v408
    %585 = vmatprep.subr.mxu0 %v413
    %586 = vmatpush1.msra.mxu0 %v412
    %587 = vmatprep.subr.mxu0 %v417
    %588 = vmatpush1.msra.mxu0 %v416
    %589 = vmatprep.subr.mxu0 %v421
    %590 = vmatpush1.msra.mxu0 %v420
    %591 = vmatprep.subr.mxu0 %v425
    %592 = vmatpush1.msra.mxu0 %v424
    %593 = vmatprep.subr.mxu0 %v429
    %594 = vmatpush1.msra.mxu0 %v428
    %595 = vmatprep.subr.mxu0 %v433
    %596 = vmatpush1.msra.mxu0 %v432
    %597 = vmatprep.mubr.f32.mxu0 %v299
    %598 = vmatmul.mubr.f32.gmra.mrb[0].mxu0 %v298
    %v599 = vpop.f32.mrb[0].mxu0
    %v600 = vadd.f32 %v447, %v599
    %v601 = vpop.f32.mrb[0].mxu0
    %v602 = vadd.f32 %v451, %v601
    %603 = vmatprep.mubr.f32.mxu0 %v301
    %604 = vmatmul.mubr.f32.gmra.mrb[0].mxu0 %v300
    %v605 = vpop.f32.mrb[0].mxu0
    %v606 = vadd.f32 %v447, %v605
    %v607 = vpop.f32.mrb[0].mxu0
    %v608 = vadd.f32 %v451, %v607
    %609 = vdwg.mxu0
    %v610 = vmax.f32 %v523, 0.0
    %v611 = vmax.f32 %v525, 0.0
    %v612 = vmax.f32 %v600, 0.0
    %v613 = vmax.f32 %v602, 0.0
    %v614 = vmax.f32 %v529, 0.0
    %v615 = vmax.f32 %v531, 0.0
    %v616 = vmax.f32 %v606, 0.0
    %v617 = vmax.f32 %v608, 0.0
    %v618 = vadd.f32 %v610, %v614
    %v619 = vrot.slane %v618, 4
    %v620 = vadd.f32 %v618, %v619
    %v621 = vrot.slane %v620, 2
    %v622 = vadd.f32 %v620, %v621
    %v623 = vrot.slane %v622, 1
    %v624 = vadd.f32 %v622, %v623
    %v625 = vadd.f32 %v611, %v615
    %v626 = vrot.slane %v625, 4
    %v627 = vadd.f32 %v625, %v626
    %v628 = vrot.slane %v627, 2
    %v629 = vadd.f32 %v627, %v628
    %v630 = vrot.slane %v629, 1
    %v631 = vadd.f32 %v629, %v630
    %v632 = vadd.f32 %v612, %v616
    %v633 = vrot.slane %v632, 4
    %v634 = vadd.f32 %v632, %v633
    %v635 = vrot.slane %v634, 2
    %v636 = vadd.f32 %v634, %v635
    %v637 = vrot.slane %v636, 1
    %v638 = vadd.f32 %v636, %v637
    %v639 = vadd.f32 %v613, %v617
    %v640 = vrot.slane %v639, 4
    %v641 = vadd.f32 %v639, %v640
    %v642 = vrot.slane %v641, 2
    %v643 = vadd.f32 %v641, %v642
    %v644 = vrot.slane %v643, 1
    %v645 = vadd.f32 %v643, %v644
    %v646 = vmul.f32 %v610, %v610
    %v647 = vmul.f32 %v611, %v611
    %v648 = vmul.f32 %v612, %v612
    %v649 = vmul.f32 %v613, %v613
    %v650 = vmul.f32 %v614, %v614
    %v651 = vmul.f32 %v615, %v615
    %v652 = vmul.f32 %v616, %v616
    %v653 = vmul.f32 %v617, %v617
    %v654 = vadd.f32 %v646, %v650
    %v655 = vrot.slane %v654, 4
    %v656 = vadd.f32 %v654, %v655
    %v657 = vrot.slane %v656, 2
    %v658 = vadd.f32 %v656, %v657
    %v659 = vrot.slane %v658, 1
    %v660 = vadd.f32 %v658, %v659
    %v661 = vadd.f32 %v647, %v651
    %v662 = vrot.slane %v661, 4
    %v663 = vadd.f32 %v661, %v662
    %v664 = vrot.slane %v663, 2
    %v665 = vadd.f32 %v663, %v664
    %v666 = vrot.slane %v665, 1
    %v667 = vadd.f32 %v665, %v666
    %v668 = vadd.f32 %v648, %v652
    %v669 = vrot.slane %v668, 4
    %v670 = vadd.f32 %v668, %v669
    %v671 = vrot.slane %v670, 2
    %v672 = vadd.f32 %v670, %v671
    %v673 = vrot.slane %v672, 1
    %v674 = vadd.f32 %v672, %v673
    %v675 = vadd.f32 %v649, %v653
    %v676 = vrot.slane %v675, 4
    %v677 = vadd.f32 %v675, %v676
    %v678 = vrot.slane %v677, 2
    %v679 = vadd.f32 %v677, %v678
    %v680 = vrot.slane %v679, 1
    %v681 = vadd.f32 %v679, %v680
    %v682 = vmul.f32 %v624, 0.0625
    %v683 = vmul.f32 %v631, 0.0625
    %v684 = vmul.f32 %v638, 0.0625
    %v685 = vmul.f32 %v645, 0.0625
    %v686 = vmul.f32 %v660, 0.0625
    %v687 = vmul.f32 %v667, 0.0625
    %v688 = vmul.f32 %v674, 0.0625
    %v689 = vmul.f32 %v681, 0.0625
    %v690 = vmul.f32 %v682, %v682
    %v691 = vmul.f32 %v683, %v683
    %v692 = vmul.f32 %v684, %v684
    %v693 = vmul.f32 %v685, %v685
    %v694 = vsub.f32 %v686, %v690
    %v695 = vsub.f32 %v687, %v691
    %v696 = vsub.f32 %v688, %v692
    %v697 = vsub.f32 %v689, %v693
    %v698 = vmax.f32 %v694, 0.0
    %v699 = vmax.f32 %v695, 0.0
    %v700 = vmax.f32 %v696, 0.0
    %v701 = vmax.f32 %v697, 0.0
    %v702 = vld [vmem:[%s7] sm:$0xf]
    %v703 = vadd.f32 %v698, 1e-05
    %v704 = vadd.f32 %v699, 1e-05
    %v705 = vadd.f32 %v700, 1e-05
    %v706 = vadd.f32 %v701, 1e-05
    %v707 = vrsqrt.pop %v703
    %v708 = vrsqrt.pop %v704
    %v709 = vrsqrt.pop %v705
    %v710 = vrsqrt.pop %v706
    %v715 = vcombine.low %v707, %v708
    %v716 = vcombine.low %v709, %v710
    %v718 = vunpack.c.l.s4 1966171168
    %v719 = vunpack.c.0.s8 %v718
    %v720 = vlaneseq
    %v721 = vshrl.u32 %v720, 7
    %v722 = vsub.s32 %v719, %v721
    %v723 = vrot.slane %v715, %v722
    %v725 = vunpack.c.l.s4 1966171168
    %v726 = vunpack.c.0.s8 %v725
    %v727 = vlaneseq
    %v728 = vshrl.u32 %v727, 7
    %v729 = vsub.s32 %v726, %v728
    %v730 = vrot.slane %v716, %v729
    %v731 = vcombine.low %v723, %v730
    %v733 = vunpack.c.l.s4 1966171168
    %v734 = vunpack.c.0.s8 %v733
    %v735 = vlaneseq
    %v736 = vshrl.u32 %v735, 7
    %v737 = vsub.s32 %v734, %v736
    %v738 = vrot.slane %v731, %v737
    %v740 = vmul.f32 %v702, %v738
    %v741 = vld [vmem:[%s8] sm:$0xf]
    %v743 = vlaneseq
    %v744 = vshrl.u32 %v743, 7
    %v745 = vsub.s32 0, %v744
    %v746 = vrot.slane %v740, %v745
    %v747 = vlaneseq
    %v748 = vshrl.u32 %v747, 7
    %v749 = vsub.s32 1, %v748
    %v750 = vrot.slane %v740, %v749
    %v751 = vlaneseq
    %v752 = vshrl.u32 %v751, 7
    %v753 = vsub.s32 2, %v752
    %v754 = vrot.slane %v740, %v753
    %v755 = vlaneseq
    %v756 = vshrl.u32 %v755, 7
    %v757 = vsub.s32 3, %v756
    %v758 = vrot.slane %v740, %v757
    %v763 = vmul.f32 %v682, %v746
    %v764 = vmul.f32 %v683, %v750
    %v765 = vmul.f32 %v684, %v754
    %v766 = vmul.f32 %v685, %v758
    %v771 = vcombine.low %v763, %v764
    %v772 = vcombine.low %v765, %v766
    %v774 = vunpack.c.l.s4 1966171168
    %v775 = vunpack.c.0.s8 %v774
    %v776 = vlaneseq
    %v777 = vshrl.u32 %v776, 7
    %v778 = vsub.s32 %v775, %v777
    %v779 = vrot.slane %v771, %v778
    %v781 = vunpack.c.l.s4 1966171168
    %v782 = vunpack.c.0.s8 %v781
    %v783 = vlaneseq
    %v784 = vshrl.u32 %v783, 7
    %v785 = vsub.s32 %v782, %v784
    %v786 = vrot.slane %v772, %v785
    %v787 = vcombine.low %v779, %v786
    %v789 = vunpack.c.l.s4 1966171168
    %v790 = vunpack.c.0.s8 %v789
    %v791 = vlaneseq
    %v792 = vshrl.u32 %v791, 7
    %v793 = vsub.s32 %v790, %v792
    %v794 = vrot.slane %v787, %v793
    %v796 = vsub.f32 %v741, %v794
    %v797 = vmul.f32 %v610, %v746
    %v798 = vmul.f32 %v611, %v750
    %v799 = vmul.f32 %v612, %v754
    %v800 = vmul.f32 %v613, %v758
    %v801 = vmul.f32 %v614, %v746
    %v802 = vmul.f32 %v615, %v750
    %v803 = vmul.f32 %v616, %v754
    %v804 = vmul.f32 %v617, %v758
    %v806 = vlaneseq
    %v807 = vshrl.u32 %v806, 7
    %v808 = vsub.s32 0, %v807
    %v809 = vrot.slane %v796, %v808
    %v810 = vlaneseq
    %v811 = vshrl.u32 %v810, 7
    %v812 = vsub.s32 1, %v811
    %v813 = vrot.slane %v796, %v812
    %v814 = vlaneseq
    %v815 = vshrl.u32 %v814, 7
    %v816 = vsub.s32 2, %v815
    %v817 = vrot.slane %v796, %v816
    %v818 = vlaneseq
    %v819 = vshrl.u32 %v818, 7
    %v820 = vsub.s32 3, %v819
    %v821 = vrot.slane %v796, %v820
    %v826 = vadd.f32 %v797, %v809
    %v827 = vadd.f32 %v798, %v813
    %v828 = vadd.f32 %v799, %v817
    %v829 = vadd.f32 %v800, %v821
    %v830 = vadd.f32 %v801, %v809
    %v831 = vadd.f32 %v802, %v813
    %v832 = vadd.f32 %v803, %v817
    %v833 = vadd.f32 %v804, %v821
    %s834 = smul.u32 8, 64
    %s835 = smul.u32 %s834, 2
    %s836 = sshll.u32 %s835, 4
    %837 = dma.done %s56, %s836
    %v838 = vld [vmem:[#allocation3] sm:$0xff]
    %v839 = vld [vmem:[#allocation3 + $0x8] sm:$0xff]
    %v840 = vld [vmem:[#allocation3 + $0x10] sm:$0xff]
    %v841 = vld [vmem:[#allocation3 + $0x18] sm:$0xff]
    %v842 = vld [vmem:[#allocation3 + $0x20] sm:$0xff]
    %v843 = vld [vmem:[#allocation3 + $0x28] sm:$0xff]
    %v844 = vld [vmem:[#allocation3 + $0x30] sm:$0xff]
    %v845 = vld [vmem:[#allocation3 + $0x38] sm:$0xff]
    %v846 = vld [vmem:[#allocation3 + $0x40] sm:$0xff]
    %v847 = vld [vmem:[#allocation3 + $0x48] sm:$0xff]
    %v848 = vld [vmem:[#allocation3 + $0x50] sm:$0xff]
    %v849 = vld [vmem:[#allocation3 + $0x58] sm:$0xff]
    %v850 = vld [vmem:[#allocation3 + $0x60] sm:$0xff]
    %v851 = vld [vmem:[#allocation3 + $0x68] sm:$0xff]
    %v852 = vld [vmem:[#allocation3 + $0x70] sm:$0xff]
    %v853 = vld [vmem:[#allocation3 + $0x78] sm:$0xff]
    %v854 = vld [vmem:[#allocation3 + $0x80] sm:$0xff]
    %v855 = vld [vmem:[#allocation3 + $0x88] sm:$0xff]
    %v856 = vld [vmem:[#allocation3 + $0x90] sm:$0xff]
    %v857 = vld [vmem:[#allocation3 + $0x98] sm:$0xff]
    %v858 = vld [vmem:[#allocation3 + $0xa0] sm:$0xff]
    %v859 = vld [vmem:[#allocation3 + $0xa8] sm:$0xff]
    %v860 = vld [vmem:[#allocation3 + $0xb0] sm:$0xff]
    %v861 = vld [vmem:[#allocation3 + $0xb8] sm:$0xff]
    %v862 = vld [vmem:[#allocation3 + $0xc0] sm:$0xff]
    %v863 = vld [vmem:[#allocation3 + $0xc8] sm:$0xff]
    %v864 = vld [vmem:[#allocation3 + $0xd0] sm:$0xff]
    %v865 = vld [vmem:[#allocation3 + $0xd8] sm:$0xff]
    %v866 = vld [vmem:[#allocation3 + $0xe0] sm:$0xff]
    %v867 = vld [vmem:[#allocation3 + $0xe8] sm:$0xff]
    %v868 = vld [vmem:[#allocation3 + $0xf0] sm:$0xff]
    %v869 = vld [vmem:[#allocation3 + $0xf8] sm:$0xff]
    %v870 = vld [vmem:[#allocation3 + $0x100] sm:$0xff]
    %v871 = vld [vmem:[#allocation3 + $0x108] sm:$0xff]
    %v872 = vld [vmem:[#allocation3 + $0x110] sm:$0xff]
    %v873 = vld [vmem:[#allocation3 + $0x118] sm:$0xff]
    %v874 = vld [vmem:[#allocation3 + $0x120] sm:$0xff]
    %v875 = vld [vmem:[#allocation3 + $0x128] sm:$0xff]
    %v876 = vld [vmem:[#allocation3 + $0x130] sm:$0xff]
    %v877 = vld [vmem:[#allocation3 + $0x138] sm:$0xff]
    %v878 = vld [vmem:[#allocation3 + $0x140] sm:$0xff]
    %v879 = vld [vmem:[#allocation3 + $0x148] sm:$0xff]
    %v880 = vld [vmem:[#allocation3 + $0x150] sm:$0xff]
    %v881 = vld [vmem:[#allocation3 + $0x158] sm:$0xff]
    %v882 = vld [vmem:[#allocation3 + $0x160] sm:$0xff]
    %v883 = vld [vmem:[#allocation3 + $0x168] sm:$0xff]
    %v884 = vld [vmem:[#allocation3 + $0x170] sm:$0xff]
    %v885 = vld [vmem:[#allocation3 + $0x178] sm:$0xff]
    %v886 = vld [vmem:[#allocation3 + $0x180] sm:$0xff]
    %v887 = vld [vmem:[#allocation3 + $0x188] sm:$0xff]
    %v888 = vld [vmem:[#allocation3 + $0x190] sm:$0xff]
    %v889 = vld [vmem:[#allocation3 + $0x198] sm:$0xff]
    %v890 = vld [vmem:[#allocation3 + $0x1a0] sm:$0xff]
    %v891 = vld [vmem:[#allocation3 + $0x1a8] sm:$0xff]
    %v892 = vld [vmem:[#allocation3 + $0x1b0] sm:$0xff]
    %v893 = vld [vmem:[#allocation3 + $0x1b8] sm:$0xff]
    %v894 = vld [vmem:[#allocation3 + $0x1c0] sm:$0xff]
    %v895 = vld [vmem:[#allocation3 + $0x1c8] sm:$0xff]
    %v896 = vld [vmem:[#allocation3 + $0x1d0] sm:$0xff]
    %v897 = vld [vmem:[#allocation3 + $0x1d8] sm:$0xff]
    %v898 = vld [vmem:[#allocation3 + $0x1e0] sm:$0xff]
    %v899 = vld [vmem:[#allocation3 + $0x1e8] sm:$0xff]
    %v900 = vld [vmem:[#allocation3 + $0x1f0] sm:$0xff]
    %v901 = vld [vmem:[#allocation3 + $0x1f8] sm:$0xff]
    %v902 = vld [vmem:[#allocation3 + $0x200] sm:$0xff]
    %v903 = vld [vmem:[#allocation3 + $0x208] sm:$0xff]
    %v904 = vld [vmem:[#allocation3 + $0x210] sm:$0xff]
    %v905 = vld [vmem:[#allocation3 + $0x218] sm:$0xff]
    %v906 = vld [vmem:[#allocation3 + $0x220] sm:$0xff]
    %v907 = vld [vmem:[#allocation3 + $0x228] sm:$0xff]
    %v908 = vld [vmem:[#allocation3 + $0x230] sm:$0xff]
    %v909 = vld [vmem:[#allocation3 + $0x238] sm:$0xff]
    %v910 = vld [vmem:[#allocation3 + $0x240] sm:$0xff]
    %v911 = vld [vmem:[#allocation3 + $0x248] sm:$0xff]
    %v912 = vld [vmem:[#allocation3 + $0x250] sm:$0xff]
    %v913 = vld [vmem:[#allocation3 + $0x258] sm:$0xff]
    %v914 = vld [vmem:[#allocation3 + $0x260] sm:$0xff]
    %v915 = vld [vmem:[#allocation3 + $0x268] sm:$0xff]
    %v916 = vld [vmem:[#allocation3 + $0x270] sm:$0xff]
    %v917 = vld [vmem:[#allocation3 + $0x278] sm:$0xff]
    %v918 = vld [vmem:[#allocation3 + $0x280] sm:$0xff]
    %v919 = vld [vmem:[#allocation3 + $0x288] sm:$0xff]
    %v920 = vld [vmem:[#allocation3 + $0x290] sm:$0xff]
    %v921 = vld [vmem:[#allocation3 + $0x298] sm:$0xff]
    %v922 = vld [vmem:[#allocation3 + $0x2a0] sm:$0xff]
    %v923 = vld [vmem:[#allocation3 + $0x2a8] sm:$0xff]
    %v924 = vld [vmem:[#allocation3 + $0x2b0] sm:$0xff]
    %v925 = vld [vmem:[#allocation3 + $0x2b8] sm:$0xff]
    %v926 = vld [vmem:[#allocation3 + $0x2c0] sm:$0xff]
    %v927 = vld [vmem:[#allocation3 + $0x2c8] sm:$0xff]
    %v928 = vld [vmem:[#allocation3 + $0x2d0] sm:$0xff]
    %v929 = vld [vmem:[#allocation3 + $0x2d8] sm:$0xff]
    %v930 = vld [vmem:[#allocation3 + $0x2e0] sm:$0xff]
    %v931 = vld [vmem:[#allocation3 + $0x2e8] sm:$0xff]
    %v932 = vld [vmem:[#allocation3 + $0x2f0] sm:$0xff]
    %v933 = vld [vmem:[#allocation3 + $0x2f8] sm:$0xff]
    %v934 = vld [vmem:[#allocation3 + $0x300] sm:$0xff]
    %v935 = vld [vmem:[#allocation3 + $0x308] sm:$0xff]
    %v936 = vld [vmem:[#allocation3 + $0x310] sm:$0xff]
    %v937 = vld [vmem:[#allocation3 + $0x318] sm:$0xff]
    %v938 = vld [vmem:[#allocation3 + $0x320] sm:$0xff]
    %v939 = vld [vmem:[#allocation3 + $0x328] sm:$0xff]
    %v940 = vld [vmem:[#allocation3 + $0x330] sm:$0xff]
    %v941 = vld [vmem:[#allocation3 + $0x338] sm:$0xff]
    %v942 = vld [vmem:[#allocation3 + $0x340] sm:$0xff]
    %v943 = vld [vmem:[#allocation3 + $0x348] sm:$0xff]
    %v944 = vld [vmem:[#allocation3 + $0x350] sm:$0xff]
    %v945 = vld [vmem:[#allocation3 + $0x358] sm:$0xff]
    %v946 = vld [vmem:[#allocation3 + $0x360] sm:$0xff]
    %v947 = vld [vmem:[#allocation3 + $0x368] sm:$0xff]
    %v948 = vld [vmem:[#allocation3 + $0x370] sm:$0xff]
    %v949 = vld [vmem:[#allocation3 + $0x378] sm:$0xff]
    %v950 = vld [vmem:[#allocation3 + $0x380] sm:$0xff]
    %v951 = vld [vmem:[#allocation3 + $0x388] sm:$0xff]
    %v952 = vld [vmem:[#allocation3 + $0x390] sm:$0xff]
    %v953 = vld [vmem:[#allocation3 + $0x398] sm:$0xff]
    %v954 = vld [vmem:[#allocation3 + $0x3a0] sm:$0xff]
    %v955 = vld [vmem:[#allocation3 + $0x3a8] sm:$0xff]
    %v956 = vld [vmem:[#allocation3 + $0x3b0] sm:$0xff]
    %v957 = vld [vmem:[#allocation3 + $0x3b8] sm:$0xff]
    %v958 = vld [vmem:[#allocation3 + $0x3c0] sm:$0xff]
    %v959 = vld [vmem:[#allocation3 + $0x3c8] sm:$0xff]
    %v960 = vld [vmem:[#allocation3 + $0x3d0] sm:$0xff]
    %v961 = vld [vmem:[#allocation3 + $0x3d8] sm:$0xff]
    %v962 = vld [vmem:[#allocation3 + $0x3e0] sm:$0xff]
    %v963 = vld [vmem:[#allocation3 + $0x3e8] sm:$0xff]
    %v964 = vld [vmem:[#allocation3 + $0x3f0] sm:$0xff]
    %v965 = vld [vmem:[#allocation3 + $0x3f8] sm:$0xff]
    %v966 = vld [vmem:[%s10] sm:$0x3]
    %v968 = vlaneseq
    %v969 = vshrl.u32 %v968, 7
    %v970 = vsub.s32 0, %v969
    %v971 = vrot.slane %v966, %v970
    %v972 = vlaneseq
    %v973 = vshrl.u32 %v972, 7
    %v974 = vsub.s32 1, %v973
    %v975 = vrot.slane %v966, %v974
    %978 = vmatprep.subr.mxu0 %v839
    %979 = vmatpush1.msra.mxu0 %v838
    %980 = vmatprep.subr.mxu0 %v841
    %981 = vmatpush1.msra.mxu0 %v840
    %982 = vmatprep.subr.mxu0 %v843
    %983 = vmatpush1.msra.mxu0 %v842
    %984 = vmatprep.subr.mxu0 %v845
    %985 = vmatpush1.msra.mxu0 %v844
    %986 = vmatprep.subr.mxu0 %v847
    %987 = vmatpush1.msra.mxu0 %v846
    %988 = vmatprep.subr.mxu0 %v849
    %989 = vmatpush1.msra.mxu0 %v848
    %990 = vmatprep.subr.mxu0 %v851
    %991 = vmatpush1.msra.mxu0 %v850
    %992 = vmatprep.subr.mxu0 %v853
    %993 = vmatpush1.msra.mxu0 %v852
    %994 = vmatprep.subr.mxu0 %v855
    %995 = vmatpush1.msra.mxu0 %v854
    %996 = vmatprep.subr.mxu0 %v857
    %997 = vmatpush1.msra.mxu0 %v856
    %998 = vmatprep.subr.mxu0 %v859
    %999 = vmatpush1.msra.mxu0 %v858
    %1000 = vmatprep.subr.mxu0 %v861
    %1001 = vmatpush1.msra.mxu0 %v860
    %1002 = vmatprep.subr.mxu0 %v863
    %1003 = vmatpush1.msra.mxu0 %v862
    %1004 = vmatprep.subr.mxu0 %v865
    %1005 = vmatpush1.msra.mxu0 %v864
    %1006 = vmatprep.subr.mxu0 %v867
    %1007 = vmatpush1.msra.mxu0 %v866
    %1008 = vmatprep.subr.mxu0 %v869
    %1009 = vmatpush1.msra.mxu0 %v868
    %1010 = vmatprep.subr.mxu0 %v871
    %1011 = vmatpush1.msra.mxu0 %v870
    %1012 = vmatprep.subr.mxu0 %v873
    %1013 = vmatpush1.msra.mxu0 %v872
    %1014 = vmatprep.subr.mxu0 %v875
    %1015 = vmatpush1.msra.mxu0 %v874
    %1016 = vmatprep.subr.mxu0 %v877
    %1017 = vmatpush1.msra.mxu0 %v876
    %1018 = vmatprep.subr.mxu0 %v879
    %1019 = vmatpush1.msra.mxu0 %v878
    %1020 = vmatprep.subr.mxu0 %v881
    %1021 = vmatpush1.msra.mxu0 %v880
    %1022 = vmatprep.subr.mxu0 %v883
    %1023 = vmatpush1.msra.mxu0 %v882
    %1024 = vmatprep.subr.mxu0 %v885
    %1025 = vmatpush1.msra.mxu0 %v884
    %1026 = vmatprep.subr.mxu0 %v887
    %1027 = vmatpush1.msra.mxu0 %v886
    %1028 = vmatprep.subr.mxu0 %v889
    %1029 = vmatpush1.msra.mxu0 %v888
    %1030 = vmatprep.subr.mxu0 %v891
    %1031 = vmatpush1.msra.mxu0 %v890
    %1032 = vmatprep.subr.mxu0 %v893
    %1033 = vmatpush1.msra.mxu0 %v892
    %1034 = vmatprep.subr.mxu0 %v895
    %1035 = vmatpush1.msra.mxu0 %v894
    %1036 = vmatprep.subr.mxu0 %v897
    %1037 = vmatpush1.msra.mxu0 %v896
    %1038 = vmatprep.subr.mxu0 %v899
    %1039 = vmatpush1.msra.mxu0 %v898
    %1040 = vmatprep.subr.mxu0 %v901
    %1041 = vmatpush1.msra.mxu0 %v900
    %1042 = vmatprep.mubr.f32.mxu0 %v827
    %1043 = vmatmul.mubr.f32.gmra.mrb[0].mxu0 %v826
    %v1044 = vpop.f32.mrb[0].mxu0
    %v1045 = vadd.f32 %v971, %v1044
    %v1046 = vpop.f32.mrb[0].mxu0
    %v1047 = vadd.f32 %v975, %v1046
    %1048 = vmatprep.mubr.f32.mxu0 %v831
    %1049 = vmatmul.mubr.f32.gmra.mrb[0].mxu0 %v830
    %v1050 = vpop.f32.mrb[0].mxu0
    %v1051 = vadd.f32 %v971, %v1050
    %v1052 = vpop.f32.mrb[0].mxu0
    %v1053 = vadd.f32 %v975, %v1052
    %1054 = vdwg.mxu0
    %1055 = vmatprep.subr.mxu0 %v903
    %1056 = vmatpush1.msra.mxu0 %v902
    %1057 = vmatprep.subr.mxu0 %v905
    %1058 = vmatpush1.msra.mxu0 %v904
    %1059 = vmatprep.subr.mxu0 %v907
    %1060 = vmatpush1.msra.mxu0 %v906
    %1061 = vmatprep.subr.mxu0 %v909
    %1062 = vmatpush1.msra.mxu0 %v908
    %1063 = vmatprep.subr.mxu0 %v911
    %1064 = vmatpush1.msra.mxu0 %v910
    %1065 = vmatprep.subr.mxu0 %v913
    %1066 = vmatpush1.msra.mxu0 %v912
    %1067 = vmatprep.subr.mxu0 %v915
    %1068 = vmatpush1.msra.mxu0 %v914
    %1069 = vmatprep.subr.mxu0 %v917
    %1070 = vmatpush1.msra.mxu0 %v916
    %1071 = vmatprep.subr.mxu0 %v919
    %1072 = vmatpush1.msra.mxu0 %v918
    %1073 = vmatprep.subr.mxu0 %v921
    %1074 = vmatpush1.msra.mxu0 %v920
    %1075 = vmatprep.subr.mxu0 %v923
    %1076 = vmatpush1.msra.mxu0 %v922
    %1077 = vmatprep.subr.mxu0 %v925
    %1078 = vmatpush1.msra.mxu0 %v924
    %1079 = vmatprep.subr.mxu0 %v927
    %1080 = vmatpush1.msra.mxu0 %v926
    %1081 = vmatprep.subr.mxu0 %v929
    %1082 = vmatpush1.msra.mxu0 %v928
    %1083 = vmatprep.subr.mxu0 %v931
    %1084 = vmatpush1.msra.mxu0 %v930
    %1085 = vmatprep.subr.mxu0 %v933
    %1086 = vmatpush1.msra.mxu0 %v932
    %1087 = vmatprep.subr.mxu0 %v935
    %1088 = vmatpush1.msra.mxu0 %v934
    %1089 = vmatprep.subr.mxu0 %v937
    %1090 = vmatpush1.msra.mxu0 %v936
    %1091 = vmatprep.subr.mxu0 %v939
    %1092 = vmatpush1.msra.mxu0 %v938
    %1093 = vmatprep.subr.mxu0 %v941
    %1094 = vmatpush1.msra.mxu0 %v940
    %1095 = vmatprep.subr.mxu0 %v943
    %1096 = vmatpush1.msra.mxu0 %v942
    %1097 = vmatprep.subr.mxu0 %v945
    %1098 = vmatpush1.msra.mxu0 %v944
    %1099 = vmatprep.subr.mxu0 %v947
    %1100 = vmatpush1.msra.mxu0 %v946
    %1101 = vmatprep.subr.mxu0 %v949
    %1102 = vmatpush1.msra.mxu0 %v948
    %1103 = vmatprep.subr.mxu0 %v951
    %1104 = vmatpush1.msra.mxu0 %v950
    %1105 = vmatprep.subr.mxu0 %v953
    %1106 = vmatpush1.msra.mxu0 %v952
    %1107 = vmatprep.subr.mxu0 %v955
    %1108 = vmatpush1.msra.mxu0 %v954
    %1109 = vmatprep.subr.mxu0 %v957
    %1110 = vmatpush1.msra.mxu0 %v956
    %1111 = vmatprep.subr.mxu0 %v959
    %1112 = vmatpush1.msra.mxu0 %v958
    %1113 = vmatprep.subr.mxu0 %v961
    %1114 = vmatpush1.msra.mxu0 %v960
    %1115 = vmatprep.subr.mxu0 %v963
    %1116 = vmatpush1.msra.mxu0 %v962
    %1117 = vmatprep.subr.mxu0 %v965
    %1118 = vmatpush1.msra.mxu0 %v964
    %1119 = vmatprep.mubr.f32.mxu0 %v829
    %1120 = vmatmul.mubr.f32.gmra.mrb[0].mxu0 %v828
    %v1121 = vpop.f32.mrb[0].mxu0
    %v1122 = vadd.f32 %v1045, %v1121
    %v1123 = vpop.f32.mrb[0].mxu0
    %v1124 = vadd.f32 %v1047, %v1123
    %1125 = vmatprep.mubr.f32.mxu0 %v833
    %1126 = vmatmul.mubr.f32.gmra.mrb[0].mxu0 %v832
    %v1127 = vpop.f32.mrb[0].mxu0
    %v1128 = vadd.f32 %v1051, %v1127
    %v1129 = vpop.f32.mrb[0].mxu0
    %v1130 = vadd.f32 %v1053, %v1129
    %1131 = vdwg.mxu0
    %v1132 = vmax.f32 %v1122, 0.0
    %v1133 = vmax.f32 %v1124, 0.0
    %v1134 = vmax.f32 %v1128, 0.0
    %v1135 = vmax.f32 %v1130, 0.0
    %v1136 = vadd.f32 %v1132, %v1134
    %v1137 = vrot.slane %v1136, 4
    %v1138 = vadd.f32 %v1136, %v1137
    %v1139 = vrot.slane %v1138, 2
    %v1140 = vadd.f32 %v1138, %v1139
    %v1141 = vrot.slane %v1140, 1
    %v1142 = vadd.f32 %v1140, %v1141
    %v1143 = vadd.f32 %v1133, %v1135
    %v1144 = vrot.slane %v1143, 4
    %v1145 = vadd.f32 %v1143, %v1144
    %v1146 = vrot.slane %v1145, 2
    %v1147 = vadd.f32 %v1145, %v1146
    %v1148 = vrot.slane %v1147, 1
    %v1149 = vadd.f32 %v1147, %v1148
    %v1150 = vmul.f32 %v1132, %v1132
    %v1151 = vmul.f32 %v1133, %v1133
    %v1152 = vmul.f32 %v1134, %v1134
    %v1153 = vmul.f32 %v1135, %v1135
    %v1154 = vadd.f32 %v1150, %v1152
    %v1155 = vrot.slane %v1154, 4
    %v1156 = vadd.f32 %v1154, %v1155
    %v1157 = vrot.slane %v1156, 2
    %v1158 = vadd.f32 %v1156, %v1157
    %v1159 = vrot.slane %v1158, 1
    %v1160 = vadd.f32 %v1158, %v1159
    %v1161 = vadd.f32 %v1151, %v1153
    %v1162 = vrot.slane %v1161, 4
    %v1163 = vadd.f32 %v1161, %v1162
    %v1164 = vrot.slane %v1163, 2
    %v1165 = vadd.f32 %v1163, %v1164
    %v1166 = vrot.slane %v1165, 1
    %v1167 = vadd.f32 %v1165, %v1166
    %v1168 = vmul.f32 %v1142, 0.0625
    %v1169 = vmul.f32 %v1149, 0.0625
    %v1170 = vmul.f32 %v1160, 0.0625
    %v1171 = vmul.f32 %v1167, 0.0625
    %v1172 = vmul.f32 %v1168, %v1168
    %v1173 = vmul.f32 %v1169, %v1169
    %v1174 = vsub.f32 %v1170, %v1172
    %v1175 = vsub.f32 %v1171, %v1173
    %v1176 = vmax.f32 %v1174, 0.0
    %v1177 = vmax.f32 %v1175, 0.0
    %v1178 = vld [vmem:[%s11] sm:$0x3]
    %v1179 = vadd.f32 %v1176, 1e-05
    %v1180 = vadd.f32 %v1177, 1e-05
    %v1181 = vrsqrt.pop %v1179
    %v1182 = vrsqrt.pop %v1180
    %v1185 = vcombine.low %v1181, %v1182
    %v1187 = vunpack.c.l.s4 1966171168
    %v1188 = vunpack.c.0.s8 %v1187
    %v1189 = vlaneseq
    %v1190 = vshrl.u32 %v1189, 7
    %v1191 = vsub.s32 %v1188, %v1190
    %v1192 = vrot.slane %v1185, %v1191
    %v1194 = vunpack.c.l.s4 1966171168
    %v1195 = vunpack.c.0.s8 %v1194
    %v1196 = vlaneseq
    %v1197 = vshrl.u32 %v1196, 7
    %v1198 = vsub.s32 %v1195, %v1197
    %v1199 = vrot.slane %v1192, %v1198
    %v1201 = vmul.f32 %v1178, %v1199
    %v1202 = vld [vmem:[%s12] sm:$0x3]
    %v1204 = vlaneseq
    %v1205 = vshrl.u32 %v1204, 7
    %v1206 = vsub.s32 0, %v1205
    %v1207 = vrot.slane %v1201, %v1206
    %v1208 = vlaneseq
    %v1209 = vshrl.u32 %v1208, 7
    %v1210 = vsub.s32 1, %v1209
    %v1211 = vrot.slane %v1201, %v1210
    %v1214 = vmul.f32 %v1168, %v1207
    %v1215 = vmul.f32 %v1169, %v1211
    %v1218 = vcombine.low %v1214, %v1215
    %v1220 = vunpack.c.l.s4 1966171168
    %v1221 = vunpack.c.0.s8 %v1220
    %v1222 = vlaneseq
    %v1223 = vshrl.u32 %v1222, 7
    %v1224 = vsub.s32 %v1221, %v1223
    %v1225 = vrot.slane %v1218, %v1224
    %v1227 = vunpack.c.l.s4 1966171168
    %v1228 = vunpack.c.0.s8 %v1227
    %v1229 = vlaneseq
    %v1230 = vshrl.u32 %v1229, 7
    %v1231 = vsub.s32 %v1228, %v1230
    %v1232 = vrot.slane %v1225, %v1231
    %v1234 = vsub.f32 %v1202, %v1232
    %v1235 = vmul.f32 %v1132, %v1207
    %v1236 = vmul.f32 %v1133, %v1211
    %v1237 = vmul.f32 %v1134, %v1207
    %v1238 = vmul.f32 %v1135, %v1211
    %v1240 = vlaneseq
    %v1241 = vshrl.u32 %v1240, 7
    %v1242 = vsub.s32 0, %v1241
    %v1243 = vrot.slane %v1234, %v1242
    %v1244 = vlaneseq
    %v1245 = vshrl.u32 %v1244, 7
    %v1246 = vsub.s32 1, %v1245
    %v1247 = vrot.slane %v1234, %v1246
    %v1250 = vadd.f32 %v1235, %v1243
    %v1251 = vadd.f32 %v1236, %v1247
    %v1252 = vadd.f32 %v1237, %v1243
    %v1253 = vadd.f32 %v1238, %v1247
    %s1254 = smul.u32 256, 1
    %s1255 = sshll.u32 %s1254, 4
    %1256 = dma.done %s68, %s1255
    %v1257 = vld [vmem:[#allocation4] sm:$0xff]
    %v1258 = vld [vmem:[#allocation4 + $0x8] sm:$0xff]
    %v1259 = vld [vmem:[#allocation4 + $0x10] sm:$0xff]
    %v1260 = vld [vmem:[#allocation4 + $0x18] sm:$0xff]
    %v1261 = vld [vmem:[#allocation4 + $0x20] sm:$0xff]
    %v1262 = vld [vmem:[#allocation4 + $0x28] sm:$0xff]
    %v1263 = vld [vmem:[#allocation4 + $0x30] sm:$0xff]
    %v1264 = vld [vmem:[#allocation4 + $0x38] sm:$0xff]
    %v1265 = vld [vmem:[#allocation4 + $0x40] sm:$0xff]
    %v1266 = vld [vmem:[#allocation4 + $0x48] sm:$0xff]
    %v1267 = vld [vmem:[#allocation4 + $0x50] sm:$0xff]
    %v1268 = vld [vmem:[#allocation4 + $0x58] sm:$0xff]
    %v1269 = vld [vmem:[#allocation4 + $0x60] sm:$0xff]
    %v1270 = vld [vmem:[#allocation4 + $0x68] sm:$0xff]
    %v1271 = vld [vmem:[#allocation4 + $0x70] sm:$0xff]
    %v1272 = vld [vmem:[#allocation4 + $0x78] sm:$0xff]
    %v1273 = vld [vmem:[#allocation4 + $0x80] sm:$0xff]
    %v1274 = vld [vmem:[#allocation4 + $0x88] sm:$0xff]
    %v1275 = vld [vmem:[#allocation4 + $0x90] sm:$0xff]
    %v1276 = vld [vmem:[#allocation4 + $0x98] sm:$0xff]
    %v1277 = vld [vmem:[#allocation4 + $0xa0] sm:$0xff]
    %v1278 = vld [vmem:[#allocation4 + $0xa8] sm:$0xff]
    %v1279 = vld [vmem:[#allocation4 + $0xb0] sm:$0xff]
    %v1280 = vld [vmem:[#allocation4 + $0xb8] sm:$0xff]
    %v1281 = vld [vmem:[#allocation4 + $0xc0] sm:$0xff]
    %v1282 = vld [vmem:[#allocation4 + $0xc8] sm:$0xff]
    %v1283 = vld [vmem:[#allocation4 + $0xd0] sm:$0xff]
    %v1284 = vld [vmem:[#allocation4 + $0xd8] sm:$0xff]
    %v1285 = vld [vmem:[#allocation4 + $0xe0] sm:$0xff]
    %v1286 = vld [vmem:[#allocation4 + $0xe8] sm:$0xff]
    %v1287 = vld [vmem:[#allocation4 + $0xf0] sm:$0xff]
    %v1288 = vld [vmem:[#allocation4 + $0xf8] sm:$0xff]
    %v1289 = vld [vmem:[%s14] sm:$0x1]
    %v1291 = vlaneseq
    %v1292 = vshrl.u32 %v1291, 7
    %v1293 = vsub.s32 0, %v1292
    %v1294 = vrot.slane %v1289, %v1293
    %1296 = vmatprep.subr.mxu0 0.0
    %1297 = vmatpush1.msra.mxu0 %v1257
    %1298 = vmatprep.subr.mxu0 0.0
    %1299 = vmatpush1.msra.mxu0 %v1258
    %1300 = vmatprep.subr.mxu0 0.0
    %1301 = vmatpush1.msra.mxu0 %v1259
    %1302 = vmatprep.subr.mxu0 0.0
    %1303 = vmatpush1.msra.mxu0 %v1260
    %1304 = vmatprep.subr.mxu0 0.0
    %1305 = vmatpush1.msra.mxu0 %v1261
    %1306 = vmatprep.subr.mxu0 0.0
    %1307 = vmatpush1.msra.mxu0 %v1262
    %1308 = vmatprep.subr.mxu0 0.0
    %1309 = vmatpush1.msra.mxu0 %v1263
    %1310 = vmatprep.subr.mxu0 0.0
    %1311 = vmatpush1.msra.mxu0 %v1264
    %1312 = vmatprep.subr.mxu0 0.0
    %1313 = vmatpush1.msra.mxu0 %v1265
    %1314 = vmatprep.subr.mxu0 0.0
    %1315 = vmatpush1.msra.mxu0 %v1266
    %1316 = vmatprep.subr.mxu0 0.0
    %1317 = vmatpush1.msra.mxu0 %v1267
    %1318 = vmatprep.subr.mxu0 0.0
    %1319 = vmatpush1.msra.mxu0 %v1268
    %1320 = vmatprep.subr.mxu0 0.0
    %1321 = vmatpush1.msra.mxu0 %v1269
    %1322 = vmatprep.subr.mxu0 0.0
    %1323 = vmatpush1.msra.mxu0 %v1270
    %1324 = vmatprep.subr.mxu0 0.0
    %1325 = vmatpush1.msra.mxu0 %v1271
    %1326 = vmatprep.subr.mxu0 0.0
    %1327 = vmatpush1.msra.mxu0 %v1272
    %1328 = vmatprep.subr.mxu0 0.0
    %1329 = vmatpush1.msra.mxu0 %v1273
    %1330 = vmatprep.subr.mxu0 0.0
    %1331 = vmatpush1.msra.mxu0 %v1274
    %1332 = vmatprep.subr.mxu0 0.0
    %1333 = vmatpush1.msra.mxu0 %v1275
    %1334 = vmatprep.subr.mxu0 0.0
    %1335 = vmatpush1.msra.mxu0 %v1276
    %1336 = vmatprep.subr.mxu0 0.0
    %1337 = vmatpush1.msra.mxu0 %v1277
    %1338 = vmatprep.subr.mxu0 0.0
    %1339 = vmatpush1.msra.mxu0 %v1278
    %1340 = vmatprep.subr.mxu0 0.0
    %1341 = vmatpush1.msra.mxu0 %v1279
    %1342 = vmatprep.subr.mxu0 0.0
    %1343 = vmatpush1.msra.mxu0 %v1280
    %1344 = vmatprep.subr.mxu0 0.0
    %1345 = vmatpush1.msra.mxu0 %v1281
    %1346 = vmatprep.subr.mxu0 0.0
    %1347 = vmatpush1.msra.mxu0 %v1282
    %1348 = vmatprep.subr.mxu0 0.0
    %1349 = vmatpush1.msra.mxu0 %v1283
    %1350 = vmatprep.subr.mxu0 0.0
    %1351 = vmatpush1.msra.mxu0 %v1284
    %1352 = vmatprep.subr.mxu0 0.0
    %1353 = vmatpush1.msra.mxu0 %v1285
    %1354 = vmatprep.subr.mxu0 0.0
    %1355 = vmatpush1.msra.mxu0 %v1286
    %1356 = vmatprep.subr.mxu0 0.0
    %1357 = vmatpush1.msra.mxu0 %v1287
    %1358 = vmatprep.subr.mxu0 0.0
    %1359 = vmatpush1.msra.mxu0 %v1288
    %1360 = vmatprep.mubr.f32.mxu0 %v1251
    %1361 = vmatmul.mubr.f32.gmra.mrb[0].mxu0 %v1250
    %v1362 = vpop.f32.mrb[0].mxu0
    %v1363 = vadd.f32 %v1294, %v1362
    %v1364 = vpop.f32.mrb[0].mxu0
    %1365 = vmatprep.mubr.f32.mxu0 %v1253
    %1366 = vmatmul.mubr.f32.gmra.mrb[0].mxu0 %v1252
    %v1367 = vpop.f32.mrb[0].mxu0
    %v1368 = vadd.f32 %v1294, %v1367
    %v1369 = vpop.f32.mrb[0].mxu0
    %1370 = vdwg.mxu0
    %1371 = vst [vmem:[#allocation6] sm:$0xff] %v1363
    %1372 = vst [vmem:[#allocation6 + $0x8] sm:$0xff] %v1368
    // Predicated region
    $region62: #{_forward_impl.1} parent=1 // pred_check
      _
    $region63: #{_forward_impl.1} parent=1 // pred_check_branch
      %1374 = sbr.rel (0) target = $region65
    $region64: #{_forward_impl.1} parent=1 // pred_region
      %s1376 = ssub.s32 256, 256
      %1377 = vsyncadd [#allocation7], %s1376
      %s1378 = sshll.u32 [#allocation6], 4
      %s1379 = int_to_ptr.vmem [resolvable:$true] %s1378
      %1384 = dma.vmem_to_hbm [thread:$0]  %s1379, 256, %s15, [#allocation7], 128, 128, 8
    $region65: #{_forward_impl.1} parent=1 // pred_fallthru
      _
    // Predicated region
    $region66: #{_forward_impl.1} parent=1 // pred_check
      _
    $region67: #{_forward_impl.1} parent=1 // pred_check_branch
      %1386 = sbr.rel (0) target = $region69
    $region68: #{_forward_impl.1} parent=1 // pred_region
      %1387 = dma.done [#allocation7], 256
    $region69: #{_forward_impl.1} parent=1 // pred_fallthru
      _
    %1388 = vsyncpa [#allocation7], 1
  %1389 = vsyncmov [#allocation5]
  %s1390 = vpop.sfrf %1389
  %p1391 = scmp.eq.s32.totalorder %s1390, 0
  %p1392 = pneg %p1391
  %1394 = shalt.err (%p1392)
  %s1395 = scalar_lea.sflag [#allocation5], 1
  %1396 = vsyncmov %s1395
  %s1397 = vpop.sfrf %1396
  %p1398 = scmp.eq.s32.totalorder %s1397, 0
  %p1399 = pneg %p1398
  %1401 = shalt.err (%p1399)
  %s1402 = scalar_lea.sflag [#allocation5], 2
  %1403 = vsyncmov %s1402
  %s1404 = vpop.sfrf %1403
  %p1405 = scmp.eq.s32.totalorder %s1404, 0
  %p1406 = pneg %p1405
  %1408 = shalt.err (%p1406)

</llo_original>
